<compile_context>
chip_gen: v7x
topology: tpu7x:2x2x1
jax: 0.10.0
libtpu: 0.0.40
codegen_flags: <defaults>
</compile_context>

<pallas_src>
import jax
import jax.numpy as jnp
from jax.experimental import pallas as pl
from jax.experimental.pallas import tpu as pltpu


def _deepfm_kernel(xcat_ref, xcont_ref, table_ref, wc_ref, bc_ref,
                   w1_ref, b1_ref, w2_ref, b2_ref, w3_ref,
                   bias_ref, b3_ref, out_ref):
    TB, F = xcat_ref.shape                  # batch tile, num categorical features
    V = table_ref.shape[0]                  # shared vocab size
    E = table_ref.shape[1] - 1              # embedding dim (last column is fc)
    C = xcont_ref.shape[1]                  # num continuous features

    xcat = xcat_ref[...]                    # (TB, F) int32
    xcont = xcont_ref[...]                  # (TB, C) f32

    # ---- fused embedding + first-order lookup: one stacked one-hot, one MXU push ----
    # rows [f*TB : (f+1)*TB) of the stacked one-hot correspond to feature f.
    idx_stacked = jnp.concatenate([xcat[:, f:f + 1] for f in range(F)], axis=0)  # (F*TB, 1)
    vocab = jax.lax.broadcasted_iota(jnp.int32, (F * TB, V), 1)                  # single iota
    onehot = (vocab == idx_stacked).astype(jnp.bfloat16)                         # (F*TB, V)
    emb_all = jnp.dot(onehot, table_ref[...],
                      preferred_element_type=jnp.float32)                        # (F*TB, E+1) f32

    emb_feats = [emb_all[f * TB:(f + 1) * TB, :E] for f in range(F)]             # F x (TB, E)
    lin_cat = emb_all[0:TB, E:E + 1]                                             # (TB, 1)
    for f in range(1, F):
        lin_cat = lin_cat + emb_all[f * TB:(f + 1) * TB, E:E + 1]

    # ---- continuous feature transform: Linear(C -> C*E), bf16 MXU, f32 accumulate ----
    xct = jnp.dot(xcont.astype(jnp.bfloat16), wc_ref[...],
                  preferred_element_type=jnp.float32) + bc_ref[...]              # (TB, C*E) f32

    # ---- FM component (field sums in f32, no 3-D materialization) ----
    e0 = emb_feats[0]
    s_fields = e0
    ss_fields = e0 * e0
    for f in range(1, F):
        e = emb_feats[f]
        s_fields = s_fields + e
        ss_fields = ss_fields + e * e
    for c in range(C):
        xc = xct[:, c * E:(c + 1) * E]
        s_fields = s_fields + xc
        ss_fields = ss_fields + xc * xc
    interaction = 0.5 * jnp.sum(s_fields * s_fields - ss_fields,
                                axis=1, keepdims=True)                           # (TB, 1)
    linear_part = lin_cat + jnp.sum(xcont, axis=1, keepdims=True) + bias_ref[0, 0]

    # ---- MLP component: one concat, three bf16 matmuls ----
    combined = jnp.concatenate(emb_feats + [xct], axis=1).astype(jnp.bfloat16)   # (TB, D_in)
    h = jnp.dot(combined, w1_ref[...], preferred_element_type=jnp.float32) + b1_ref[...]
    h = jnp.maximum(h, 0.0)
    h = jnp.dot(h.astype(jnp.bfloat16), w2_ref[...],
                preferred_element_type=jnp.float32) + b2_ref[...]
    h = jnp.maximum(h, 0.0)
    mlp_y = jnp.dot(h.astype(jnp.bfloat16), w3_ref[...],
                    preferred_element_type=jnp.float32) + b3_ref[0, 0]           # (TB, 1)

    y_col = linear_part + interaction + mlp_y                                    # (TB, 1)

    # ---- lane-dense output: transpose the per-row scalar column into a (1, TB) row
    #      via an identity mask + cross-sublane reduce (avoids masked 1-lane stores). ----
    rr = jax.lax.broadcasted_iota(jnp.int32, (TB, TB), 0)
    cc = jax.lax.broadcasted_iota(jnp.int32, (TB, TB), 1)
    eye = (rr == cc).astype(jnp.float32)
    out_ref[...] = jnp.sum(y_col * eye, axis=0, keepdims=True)                   # (1, TB)


def _const_spec(shape):
    zeros = (0,) * len(shape)
    return pl.BlockSpec(shape, lambda i: zeros)


def deepfm_forward(x_cat, x_cont, params, *, tile_b=128):
    B, F = x_cat.shape
    C = x_cont.shape[1]
    V, E = params["emb"].shape
    D_in, H1 = params["w1"].shape
    H2 = params["w2"].shape[1]

    # One-time parameter prep (layout plumbing, not per-step compute):
    # fuse [emb | fc] into one (V, E+1) table and store MXU weights in bf16.
    table = jnp.concatenate([params["emb"], params["fc"]], axis=1).astype(jnp.bfloat16)
    wc = params["wc"].astype(jnp.bfloat16)
    w1 = params["w1"].astype(jnp.bfloat16)
    w2 = params["w2"].astype(jnp.bfloat16)
    w3 = params["w3"].astype(jnp.bfloat16)
    bc = params["bc"].astype(jnp.float32)
    b1 = params["b1"].astype(jnp.float32)
    b2 = params["b2"].astype(jnp.float32)
    bias = params["bias"].reshape(1, 1).astype(jnp.float32)   # SMEM scalar
    b3 = params["b3"].reshape(1, 1).astype(jnp.float32)       # SMEM scalar

    # Pad the batch to a multiple of the tile (index 0 is a valid table row).
    Bp = ((B + tile_b - 1) // tile_b) * tile_b
    if Bp != B:
        x_cat = jnp.pad(x_cat, ((0, Bp - B), (0, 0)))
        x_cont = jnp.pad(x_cont, ((0, Bp - B), (0, 0)))
    n_tiles = Bp // tile_b

    smem_spec = pl.BlockSpec(memory_space=pltpu.MemorySpace.SMEM)

    out = pl.pallas_call(
        _deepfm_kernel,
        out_shape=jax.ShapeDtypeStruct((1, Bp), jnp.float32),
        grid=(n_tiles,),
        in_specs=[
            pl.BlockSpec((tile_b, F), lambda i: (i, 0)),   # x_cat   (tiled over batch)
            pl.BlockSpec((tile_b, C), lambda i: (i, 0)),   # x_cont  (tiled over batch)
            _const_spec((V, E + 1)),                       # fused [emb | fc] table (resident)
            _const_spec((C, C * E)),                       # wc
            _const_spec((1, C * E)),                       # bc
            _const_spec((D_in, H1)),                       # w1
            _const_spec((1, H1)),                          # b1
            _const_spec((H1, H2)),                         # w2
            _const_spec((1, H2)),                          # b2
            _const_spec((H2, 1)),                          # w3
            smem_spec,                                     # bias  (scalar)
            smem_spec,                                     # b3    (scalar)
        ],
        out_specs=pl.BlockSpec((1, tile_b), lambda i: (0, i)),   # lane-dense output row
        compiler_params=pltpu.CompilerParams(
            dimension_semantics=("parallel",),
            vmem_limit_bytes=32 * 1024 * 1024,
        ),
    )(x_cat, x_cont, table, wc, bc, w1, b1, w2, b2, w3, bias, b3)

    return out[0, :B]                                           # (B,)  == squeeze(1)


def deepfm_reference(x_cat, x_cont, params):
    """Pure-JAX f32 reference matching the PyTorch forward (eval mode)."""
    B = x_cat.shape[0]
    E = params["emb"].shape[1]
    C = x_cont.shape[1]
    emb = params["emb"][x_cat]                        # (B, F, E)
    fcv = params["fc"][x_cat]                         # (B, F, 1)
    xct = x_cont @ params["wc"] + params["bc"]        # (B, C*E)
    xct3 = xct.reshape(B, C, E)
    fm_input = jnp.concatenate([emb, xct3], axis=1)
    linear = fcv.sum(axis=1) + params["bias"][0] + x_cont.sum(axis=1, keepdims=True)
    sos = fm_input.sum(axis=1) ** 2
    ssq = (fm_input ** 2).sum(axis=1)
    inter = 0.5 * (sos - ssq).sum(axis=1, keepdims=True)
    fm_y = linear + inter
    combined = jnp.concatenate([emb.reshape(B, -1), xct], axis=1)
    h = jax.nn.relu(combined @ params["w1"] + params["b1"])
    h = jax.nn.relu(h @ params["w2"] + params["b2"])
    mlp_y = h @ params["w3"] + params["b3"]
    return (fm_y + mlp_y)[:, 0]


if __name__ == "__main__":
    # Configuration consistent with the module:
    #   input_dims = [10, 20, 30] -> V = 60 shared embedding rows, F = 3 categorical
    #   embedding_dim E = 8; continuous = genre_embedding(4) + year(1) -> C = 5
    #   mlp_dims = [32, 16]; mlp_input_dim = F*E + C*E = 64
    input_dims = [10, 20, 30]
    V = sum(input_dims)
    F = len(input_dims)
    E = 8
    C = 5
    H1, H2 = 32, 16
    D_in = F * E + C * E
    B = 200            # exercises 2 batch tiles of 128 (with padding) on the grid

    key = jax.random.PRNGKey(0)
    ks = jax.random.split(key, 12)

    params = {
        "emb": jax.random.normal(ks[0], (V, E), jnp.float32) * 0.1,
        "fc": jax.random.normal(ks[1], (V, 1), jnp.float32) * 0.1,
        "bias": jnp.zeros((1, 1), jnp.float32),
        "wc": jax.random.normal(ks[2], (C, C * E), jnp.float32) * 0.1,  # Linear(C, C*E), transposed
        "bc": jax.random.normal(ks[3], (1, C * E), jnp.float32) * 0.1,
        "w1": jax.random.normal(ks[4], (D_in, H1), jnp.float32) * 0.1,
        "b1": jax.random.normal(ks[5], (1, H1), jnp.float32) * 0.1,
        "w2": jax.random.normal(ks[6], (H1, H2), jnp.float32) * 0.1,
        "b2": jax.random.normal(ks[7], (1, H2), jnp.float32) * 0.1,
        "w3": jax.random.normal(ks[8], (H2, 1), jnp.float32) * 0.1,
        "b3": jax.random.normal(ks[9], (1, 1), jnp.float32) * 0.1,
    }

    x_cat = jax.random.randint(ks[10], (B, F), 0, V, dtype=jnp.int32)
    x_cont = jax.random.normal(ks[11], (B, C), jnp.float32)

    y = deepfm_forward(x_cat, x_cont, params, tile_b=128)
    y = jax.block_until_ready(y)

    y_ref = deepfm_reference(x_cat, x_cont, params)
    assert y.shape == (B,)
    # bf16 MXU inputs (f32 accumulation) vs f32 reference -> relaxed tolerance.
    assert jnp.allclose(y, y_ref, rtol=5e-2, atol=5e-2), float(jnp.max(jnp.abs(y - y_ref)))

    print("KERNEL_OK")
</pallas_src>

<mosaic_0001>
module attributes {stable_mosaic.version = 11 : i64} {
  func.func @_deepfm_kernel(%arg0: i32, %arg1: memref<128x3xi32, #tpu.memory_space<vmem>>, %arg2: memref<128x5xf32, #tpu.memory_space<vmem>>, %arg3: memref<60x9xbf16, #tpu.memory_space<vmem>>, %arg4: memref<5x40xbf16, #tpu.memory_space<vmem>>, %arg5: memref<1x40xf32, #tpu.memory_space<vmem>>, %arg6: memref<64x32xbf16, #tpu.memory_space<vmem>>, %arg7: memref<1x32xf32, #tpu.memory_space<vmem>>, %arg8: memref<32x16xbf16, #tpu.memory_space<vmem>>, %arg9: memref<1x16xf32, #tpu.memory_space<vmem>>, %arg10: memref<16x1xbf16, #tpu.memory_space<vmem>>, %arg11: memref<1x1xf32, #tpu.memory_space<smem>>, %arg12: memref<1x1xf32, #tpu.memory_space<smem>>, %arg13: memref<1x128xf32, #tpu.memory_space<vmem>>) attributes {dimension_semantics = [#tpu.dimension_semantics<parallel>], iteration_bounds = array<i64: 2>, scalar_prefetch = 0 : i64, scratch_operands = 0 : i64, tpu.core_type = #tpu.core_type<tc>, window_params = [{transform_indices = @transform_0, window_bounds = array<i64: 128, 3>}, {transform_indices = @transform_1, window_bounds = array<i64: 128, 5>}, {pipeline_mode = #tpu.pipeline_mode<synchronous>, transform_indices = @transform_2, window_bounds = array<i64: 60, 9>}, {pipeline_mode = #tpu.pipeline_mode<synchronous>, transform_indices = @transform_3, window_bounds = array<i64: 5, 40>}, {pipeline_mode = #tpu.pipeline_mode<synchronous>, transform_indices = @transform_4, window_bounds = array<i64: 1, 40>}, {pipeline_mode = #tpu.pipeline_mode<synchronous>, transform_indices = @transform_5, window_bounds = array<i64: 64, 32>}, {pipeline_mode = #tpu.pipeline_mode<synchronous>, transform_indices = @transform_6, window_bounds = array<i64: 1, 32>}, {pipeline_mode = #tpu.pipeline_mode<synchronous>, transform_indices = @transform_7, window_bounds = array<i64: 32, 16>}, {pipeline_mode = #tpu.pipeline_mode<synchronous>, transform_indices = @transform_8, window_bounds = array<i64: 1, 16>}, {pipeline_mode = #tpu.pipeline_mode<synchronous>, transform_indices = @transform_9, window_bounds = array<i64: 16, 1>}, {transform_indices = @transform_10, window_bounds = array<i64: 1, 1>}, {transform_indices = @transform_11, window_bounds = array<i64: 1, 1>}, {transform_indices = @transform_12, window_bounds = array<i64: 1, 128>}]} {
    %c0 = arith.constant 0 : index
    %c0_0 = arith.constant 0 : index
    %0 = vector.load %arg1[%c0, %c0_0] : memref<128x3xi32, #tpu.memory_space<vmem>>, vector<128x3xi32>
    %c0_1 = arith.constant 0 : index
    %c0_2 = arith.constant 0 : index
    %1 = vector.load %arg2[%c0_1, %c0_2] : memref<128x5xf32, #tpu.memory_space<vmem>>, vector<128x5xf32>
    %2 = vector.extract_strided_slice %0 {offsets = [0, 0], sizes = [128, 1], strides = [1, 1]} : vector<128x3xi32> to vector<128x1xi32>
    %3 = vector.extract_strided_slice %0 {offsets = [0, 1], sizes = [128, 1], strides = [1, 1]} : vector<128x3xi32> to vector<128x1xi32>
    %4 = vector.extract_strided_slice %0 {offsets = [0, 2], sizes = [128, 1], strides = [1, 1]} : vector<128x3xi32> to vector<128x1xi32>
    %5 = tpu.concatenate %2, %3, %4 in 0 : vector<128x1xi32>, vector<128x1xi32>, vector<128x1xi32> -> vector<384x1xi32>
    %6 = tpu.iota {dimensions = array<i32: 1>} : vector<384x60xi32>
    %7 = vector.broadcast %5 : vector<384x1xi32> to vector<384x60xi32>
    %8 = arith.cmpi eq, %6, %7 : vector<384x60xi32>
    %9 = arith.extui %8 : vector<384x60xi1> to vector<384x60xi32>
    %10 = arith.sitofp %9 : vector<384x60xi32> to vector<384x60xf32>
    %11 = arith.truncf %10 : vector<384x60xf32> to vector<384x60xbf16>
    %c0_3 = arith.constant 0 : index
    %c0_4 = arith.constant 0 : index
    %12 = vector.load %arg3[%c0_3, %c0_4] : memref<60x9xbf16, #tpu.memory_space<vmem>>, vector<60x9xbf16>
    %cst = arith.constant dense<0.000000e+00> : vector<384x9xf32>
    %13 = tpu.matmul %11, %12, %cst {dimension_numbers = #tpu.dot_dimension_numbers<[1], [0], [0], [1], [0, 0, 1, 1], [], []>} : vector<384x60xbf16>, vector<60x9xbf16>, vector<384x9xf32> -> vector<384x9xf32>
    %14 = vector.extract_strided_slice %13 {offsets = [0, 0], sizes = [128, 8], strides = [1, 1]} : vector<384x9xf32> to vector<128x8xf32>
    %15 = vector.extract_strided_slice %13 {offsets = [128, 0], sizes = [128, 8], strides = [1, 1]} : vector<384x9xf32> to vector<128x8xf32>
    %16 = vector.extract_strided_slice %13 {offsets = [256, 0], sizes = [128, 8], strides = [1, 1]} : vector<384x9xf32> to vector<128x8xf32>
    %17 = vector.extract_strided_slice %13 {offsets = [0, 8], sizes = [128, 1], strides = [1, 1]} : vector<384x9xf32> to vector<128x1xf32>
    %18 = vector.extract_strided_slice %13 {offsets = [128, 8], sizes = [128, 1], strides = [1, 1]} : vector<384x9xf32> to vector<128x1xf32>
    %19 = arith.addf %17, %18 : vector<128x1xf32>
    %20 = vector.extract_strided_slice %13 {offsets = [256, 8], sizes = [128, 1], strides = [1, 1]} : vector<384x9xf32> to vector<128x1xf32>
    %21 = arith.addf %19, %20 : vector<128x1xf32>
    %22 = arith.truncf %1 : vector<128x5xf32> to vector<128x5xbf16>
    %c0_5 = arith.constant 0 : index
    %c0_6 = arith.constant 0 : index
    %23 = vector.load %arg4[%c0_5, %c0_6] : memref<5x40xbf16, #tpu.memory_space<vmem>>, vector<5x40xbf16>
    %cst_7 = arith.constant dense<0.000000e+00> : vector<128x40xf32>
    %24 = tpu.matmul %22, %23, %cst_7 {dimension_numbers = #tpu.dot_dimension_numbers<[1], [0], [0], [1], [0, 0, 1, 1], [], []>} : vector<128x5xbf16>, vector<5x40xbf16>, vector<128x40xf32> -> vector<128x40xf32>
    %c0_8 = arith.constant 0 : index
    %c0_9 = arith.constant 0 : index
    %25 = vector.load %arg5[%c0_8, %c0_9] : memref<1x40xf32, #tpu.memory_space<vmem>>, vector<1x40xf32>
    %26 = vector.broadcast %25 : vector<1x40xf32> to vector<128x40xf32>
    %27 = arith.addf %24, %26 : vector<128x40xf32>
    %28 = arith.mulf %14, %14 : vector<128x8xf32>
    %29 = arith.addf %14, %15 : vector<128x8xf32>
    %30 = arith.mulf %15, %15 : vector<128x8xf32>
    %31 = arith.addf %28, %30 : vector<128x8xf32>
    %32 = arith.addf %29, %16 : vector<128x8xf32>
    %33 = arith.mulf %16, %16 : vector<128x8xf32>
    %34 = arith.addf %31, %33 : vector<128x8xf32>
    %35 = vector.extract_strided_slice %27 {offsets = [0, 0], sizes = [128, 8], strides = [1, 1]} : vector<128x40xf32> to vector<128x8xf32>
    %36 = arith.addf %32, %35 : vector<128x8xf32>
    %37 = arith.mulf %35, %35 : vector<128x8xf32>
    %38 = arith.addf %34, %37 : vector<128x8xf32>
    %39 = vector.extract_strided_slice %27 {offsets = [0, 8], sizes = [128, 8], strides = [1, 1]} : vector<128x40xf32> to vector<128x8xf32>
    %40 = arith.addf %36, %39 : vector<128x8xf32>
    %41 = arith.mulf %39, %39 : vector<128x8xf32>
    %42 = arith.addf %38, %41 : vector<128x8xf32>
    %43 = vector.extract_strided_slice %27 {offsets = [0, 16], sizes = [128, 8], strides = [1, 1]} : vector<128x40xf32> to vector<128x8xf32>
    %44 = arith.addf %40, %43 : vector<128x8xf32>
    %45 = arith.mulf %43, %43 : vector<128x8xf32>
    %46 = arith.addf %42, %45 : vector<128x8xf32>
    %47 = vector.extract_strided_slice %27 {offsets = [0, 24], sizes = [128, 8], strides = [1, 1]} : vector<128x40xf32> to vector<128x8xf32>
    %48 = arith.addf %44, %47 : vector<128x8xf32>
    %49 = arith.mulf %47, %47 : vector<128x8xf32>
    %50 = arith.addf %46, %49 : vector<128x8xf32>
    %51 = vector.extract_strided_slice %27 {offsets = [0, 32], sizes = [128, 8], strides = [1, 1]} : vector<128x40xf32> to vector<128x8xf32>
    %52 = arith.addf %48, %51 : vector<128x8xf32>
    %53 = arith.mulf %51, %51 : vector<128x8xf32>
    %54 = arith.addf %50, %53 : vector<128x8xf32>
    %55 = arith.mulf %52, %52 : vector<128x8xf32>
    %56 = arith.subf %55, %54 : vector<128x8xf32>
    %cst_10 = arith.constant dense<0.000000e+00> : vector<128xf32>
    %57 = vector.multi_reduction <add>, %56, %cst_10 [1] : vector<128x8xf32> to vector<128xf32>
    %58 = vector.shape_cast %57 : vector<128xf32> to vector<128x1xf32>
    %cst_11 = arith.constant 5.000000e-01 : f32
    %59 = vector.broadcast %cst_11 : f32 to vector<128x1xf32>
    %60 = arith.mulf %59, %58 : vector<128x1xf32>
    %cst_12 = arith.constant dense<0.000000e+00> : vector<128xf32>
    %61 = vector.multi_reduction <add>, %1, %cst_12 [1] : vector<128x5xf32> to vector<128xf32>
    %62 = vector.shape_cast %61 : vector<128xf32> to vector<128x1xf32>
    %63 = arith.addf %21, %62 : vector<128x1xf32>
    %c0_13 = arith.constant 0 : index
    %c0_14 = arith.constant 0 : index
    %64 = memref.load %arg11[%c0_13, %c0_14] : memref<1x1xf32, #tpu.memory_space<smem>>
    %65 = vector.broadcast %64 : f32 to vector<128x1xf32>
    %66 = arith.addf %63, %65 : vector<128x1xf32>
    %67 = tpu.concatenate %14, %15, %16, %27 in 1 : vector<128x8xf32>, vector<128x8xf32>, vector<128x8xf32>, vector<128x40xf32> -> vector<128x64xf32>
    %68 = arith.truncf %67 : vector<128x64xf32> to vector<128x64xbf16>
    %c0_15 = arith.constant 0 : index
    %c0_16 = arith.constant 0 : index
    %69 = vector.load %arg6[%c0_15, %c0_16] : memref<64x32xbf16, #tpu.memory_space<vmem>>, vector<64x32xbf16>
    %cst_17 = arith.constant dense<0.000000e+00> : vector<128x32xf32>
    %70 = tpu.matmul %68, %69, %cst_17 {dimension_numbers = #tpu.dot_dimension_numbers<[1], [0], [0], [1], [0, 0, 1, 1], [], []>} : vector<128x64xbf16>, vector<64x32xbf16>, vector<128x32xf32> -> vector<128x32xf32>
    %c0_18 = arith.constant 0 : index
    %c0_19 = arith.constant 0 : index
    %71 = vector.load %arg7[%c0_18, %c0_19] : memref<1x32xf32, #tpu.memory_space<vmem>>, vector<1x32xf32>
    %72 = vector.broadcast %71 : vector<1x32xf32> to vector<128x32xf32>
    %73 = arith.addf %70, %72 : vector<128x32xf32>
    %cst_20 = arith.constant 0.000000e+00 : f32
    %74 = vector.broadcast %cst_20 : f32 to vector<128x32xf32>
    %75 = arith.maximumf %73, %74 : vector<128x32xf32>
    %76 = arith.truncf %75 : vector<128x32xf32> to vector<128x32xbf16>
    %c0_21 = arith.constant 0 : index
    %c0_22 = arith.constant 0 : index
    %77 = vector.load %arg8[%c0_21, %c0_22] : memref<32x16xbf16, #tpu.memory_space<vmem>>, vector<32x16xbf16>
    %cst_23 = arith.constant dense<0.000000e+00> : vector<128x16xf32>
    %78 = tpu.matmul %76, %77, %cst_23 {dimension_numbers = #tpu.dot_dimension_numbers<[1], [0], [0], [1], [0, 0, 1, 1], [], []>} : vector<128x32xbf16>, vector<32x16xbf16>, vector<128x16xf32> -> vector<128x16xf32>
    %c0_24 = arith.constant 0 : index
    %c0_25 = arith.constant 0 : index
    %79 = vector.load %arg9[%c0_24, %c0_25] : memref<1x16xf32, #tpu.memory_space<vmem>>, vector<1x16xf32>
    %80 = vector.broadcast %79 : vector<1x16xf32> to vector<128x16xf32>
    %81 = arith.addf %78, %80 : vector<128x16xf32>
    %cst_26 = arith.constant 0.000000e+00 : f32
    %82 = vector.broadcast %cst_26 : f32 to vector<128x16xf32>
    %83 = arith.maximumf %81, %82 : vector<128x16xf32>
    %84 = arith.truncf %83 : vector<128x16xf32> to vector<128x16xbf16>
    %c0_27 = arith.constant 0 : index
    %c0_28 = arith.constant 0 : index
    %85 = vector.load %arg10[%c0_27, %c0_28] : memref<16x1xbf16, #tpu.memory_space<vmem>>, vector<16x1xbf16>
    %cst_29 = arith.constant dense<0.000000e+00> : vector<128x1xf32>
    %86 = tpu.matmul %84, %85, %cst_29 {dimension_numbers = #tpu.dot_dimension_numbers<[1], [0], [0], [1], [0, 0, 1, 1], [], []>} : vector<128x16xbf16>, vector<16x1xbf16>, vector<128x1xf32> -> vector<128x1xf32>
    %c0_30 = arith.constant 0 : index
    %c0_31 = arith.constant 0 : index
    %87 = memref.load %arg12[%c0_30, %c0_31] : memref<1x1xf32, #tpu.memory_space<smem>>
    %88 = vector.broadcast %87 : f32 to vector<128x1xf32>
    %89 = arith.addf %86, %88 : vector<128x1xf32>
    %90 = arith.addf %66, %60 : vector<128x1xf32>
    %91 = arith.addf %90, %89 : vector<128x1xf32>
    %92 = tpu.iota {dimensions = array<i32: 0>} : vector<128x128xi32>
    %93 = tpu.iota {dimensions = array<i32: 1>} : vector<128x128xi32>
    %94 = arith.cmpi eq, %92, %93 : vector<128x128xi32>
    %95 = arith.extui %94 : vector<128x128xi1> to vector<128x128xi32>
    %96 = arith.sitofp %95 : vector<128x128xi32> to vector<128x128xf32>
    %97 = vector.broadcast %91 : vector<128x1xf32> to vector<128x128xf32>
    %98 = arith.mulf %97, %96 : vector<128x128xf32>
    %cst_32 = arith.constant dense<0.000000e+00> : vector<128xf32>
    %99 = vector.multi_reduction <add>, %98, %cst_32 [0] : vector<128x128xf32> to vector<128xf32>
    %100 = vector.shape_cast %99 : vector<128xf32> to vector<1x128xf32>
    %c0_33 = arith.constant 0 : index
    %c0_34 = arith.constant 0 : index
    %101 = vector.load %arg13[%c0_33, %c0_34] : memref<1x128xf32, #tpu.memory_space<vmem>>, vector<1x128xf32>
    tpu.vector_store %arg13[%c0_33, %c0_34], %100 {strides = array<i32>} : memref<1x128xf32, #tpu.memory_space<vmem>>, vector<1x128xf32>,
    return
  }
  func.func @transform_0(%arg0: i32) -> (i32, i32) {
    %c0_i32 = arith.constant 0 : i32
    %c0_i32_0 = arith.constant 0 : i32
    return %arg0, %c0_i32 : i32, i32
  }
  func.func @transform_1(%arg0: i32) -> (i32, i32) {
    %c0_i32 = arith.constant 0 : i32
    %c0_i32_0 = arith.constant 0 : i32
    return %arg0, %c0_i32 : i32, i32
  }
  func.func @transform_2(%arg0: i32) -> (i32, i32) {
    %c0_i32 = arith.constant 0 : i32
    %c0_i32_0 = arith.constant 0 : i32
    %c0_i32_1 = arith.constant 0 : i32
    return %c0_i32, %c0_i32_0 : i32, i32
  }
  func.func @transform_3(%arg0: i32) -> (i32, i32) {
    %c0_i32 = arith.constant 0 : i32
    %c0_i32_0 = arith.constant 0 : i32
    %c0_i32_1 = arith.constant 0 : i32
    return %c0_i32, %c0_i32_0 : i32, i32
  }
  func.func @transform_4(%arg0: i32) -> (i32, i32) {
    %c0_i32 = arith.constant 0 : i32
    %c0_i32_0 = arith.constant 0 : i32
    %c0_i32_1 = arith.constant 0 : i32
    return %c0_i32, %c0_i32_0 : i32, i32
  }
  func.func @transform_5(%arg0: i32) -> (i32, i32) {
    %c0_i32 = arith.constant 0 : i32
    %c0_i32_0 = arith.constant 0 : i32
    %c0_i32_1 = arith.constant 0 : i32
    return %c0_i32, %c0_i32_0 : i32, i32
  }
  func.func @transform_6(%arg0: i32) -> (i32, i32) {
    %c0_i32 = arith.constant 0 : i32
    %c0_i32_0 = arith.constant 0 : i32
    %c0_i32_1 = arith.constant 0 : i32
    return %c0_i32, %c0_i32_0 : i32, i32
  }
  func.func @transform_7(%arg0: i32) -> (i32, i32) {
    %c0_i32 = arith.constant 0 : i32
    %c0_i32_0 = arith.constant 0 : i32
    %c0_i32_1 = arith.constant 0 : i32
    return %c0_i32, %c0_i32_0 : i32, i32
  }
  func.func @transform_8(%arg0: i32) -> (i32, i32) {
    %c0_i32 = arith.constant 0 : i32
    %c0_i32_0 = arith.constant 0 : i32
    %c0_i32_1 = arith.constant 0 : i32
    return %c0_i32, %c0_i32_0 : i32, i32
  }
  func.func @transform_9(%arg0: i32) -> (i32, i32) {
    %c0_i32 = arith.constant 0 : i32
    %c0_i32_0 = arith.constant 0 : i32
    %c0_i32_1 = arith.constant 0 : i32
    return %c0_i32, %c0_i32_0 : i32, i32
  }
  func.func @transform_10(%arg0: i32) -> (i32, i32) {
    %c0_i32 = arith.constant 0 : i32
    %c0_i32_0 = arith.constant 0 : i32
    %c0_i32_1 = arith.constant 0 : i32
    return %c0_i32, %c0_i32_0 : i32, i32
  }
  func.func @transform_11(%arg0: i32) -> (i32, i32) {
    %c0_i32 = arith.constant 0 : i32
    %c0_i32_0 = arith.constant 0 : i32
    %c0_i32_1 = arith.constant 0 : i32
    return %c0_i32, %c0_i32_0 : i32, i32
  }
  func.func @transform_12(%arg0: i32) -> (i32, i32) {
    %c0_i32 = arith.constant 0 : i32
    %c0_i32_0 = arith.constant 0 : i32
    return %c0_i32, %arg0 : i32, i32
  }
}

</mosaic_0001>

<llo_original>
// kernel: tpu_custom_call.1
$region0: #{tpu_custom_call.1}
  #allocation0 [shape = 'u32[]', space=smem, size = 0x4, offset = 0x4, fixed_abs, tag = 'smem constant byte address 0x4 - core index']
  #allocation1 [shape = 'u32[144,128]{1,0:T(1,128)}', space=vmem, size = 0x12000, scoped, tag = 'internal scratch']
  #allocation2 [shape = 'f32[1,1]{1,0:T(1,128)S(6)}', space=smem, size = 0x200, scoped, tag = 'scoped memory for tpu_custom_call.1']
  #allocation3 [shape = 'f32[1,1]{1,0:T(1,128)S(6)}', space=smem, size = 0x200, scoped, tag = 'scoped memory for tpu_custom_call.1']
  %s0 = inlined_call_operand.vmem [shape: s32[256,3], index: 0, kind: input, shape index: {}]
  %s1 = inlined_call_operand.vmem [shape: f32[256,5], index: 1, kind: input, shape index: {}]
  %s2 = inlined_call_operand.vmem [shape: bf16[60,9], index: 2, kind: input, shape index: {}]
  %s3 = inlined_call_operand.vmem [shape: bf16[5,40], index: 3, kind: input, shape index: {}]
  %s4 = inlined_call_operand.vmem [shape: f32[1,40], index: 4, kind: input, shape index: {}]
  %s5 = inlined_call_operand.vmem [shape: bf16[64,32], index: 5, kind: input, shape index: {}]
  %s6 = inlined_call_operand.vmem [shape: f32[1,32], index: 6, kind: input, shape index: {}]
  %s7 = inlined_call_operand.vmem [shape: bf16[32,16], index: 7, kind: input, shape index: {}]
  %s8 = inlined_call_operand.vmem [shape: f32[1,16], index: 8, kind: input, shape index: {}]
  %s9 = inlined_call_operand.vmem [shape: bf16[16,1], index: 9, kind: input, shape index: {}]
  %s10 = inlined_call_operand.<no memory space> [shape: f32[1,1], index: 10, kind: input, shape index: {}]
  %s11 = inlined_call_operand.<no memory space> [shape: f32[1,1], index: 11, kind: input, shape index: {}]
  %s12 = inlined_call_operand.hbm [shape: f32[1,256], index: 12, kind: output, shape index: {}]
  %s13 = sld [smem:[#allocation0]]
  $region81: #{tpu_custom_call.1} parent=0
    _
  %s15 = ssub.s32 1, %s13
  %s16 = scalar_select 0, %s15, %s13
  %17 = sst [smem:[#allocation2]] %s10
  %18 = sst [smem:[#allocation3]] %s11
  $region1: #{tpu_custom_call.1} parent=0
    #allocation4 [shape = 'u8[1024]{0}', space=vmem, size = 0x400, scoped, tag = 'output window, operand 0']
    #allocation5 [shape = 's32[2]{0}', space=sflag, size = 0x8, scoped, tag = 'scoped memory for tpu_custom_call.1']
    %19 = vsyncpa [#allocation5], 0
    %s20 = scalar_lea.sflag [#allocation5], 1
    %21 = vsyncpa %s20, 0
    loop: start=0, step=1, limit=4
    $region2: #{tpu_custom_call.1} parent=1 // loop_pre_header
      _
    $region3: #{tpu_custom_call.1} parent=1 // loop_header
      %s23 = sphi 0, %s27
      %p24 = scmp.ge.s32.totalorder %s23, 4
      %s33 = sphi 0, %s35
      %s36 = sphi 0, %s33
      %s37 = sphi 0, %s36
      %s53 = sphi 0, %s37
      %s59 = sphi 0, %s61
      %s62 = sphi 0, %s59
      %s63 = sphi 0, %s62
      %s79 = sphi 0, %s63
      %s83 = sphi 0, %s83
      %s85 = sphi 0, %s83
      %s86 = sphi 0, %s85
      %s100 = sphi 0, %s86
      %s104 = sphi 0, %s104
      %s106 = sphi 0, %s104
      %s107 = sphi 0, %s106
      %s121 = sphi 0, %s107
      %s125 = sphi 0, %s125
      %s127 = sphi 0, %s125
      %s128 = sphi 0, %s127
      %s142 = sphi 0, %s128
      %s146 = sphi 0, %s146
      %s148 = sphi 0, %s146
      %s149 = sphi 0, %s148
      %s163 = sphi 0, %s149
      %s167 = sphi 0, %s167
      %s169 = sphi 0, %s167
      %s170 = sphi 0, %s169
      %s184 = sphi 0, %s170
      %s188 = sphi 0, %s188
      %s190 = sphi 0, %s188
      %s191 = sphi 0, %s190
      %s205 = sphi 0, %s191
      %s209 = sphi 0, %s209
      %s211 = sphi 0, %s209
      %s212 = sphi 0, %s211
      %s226 = sphi 0, %s212
      %s230 = sphi 0, %s230
      %s232 = sphi 0, %s230
      %s233 = sphi 0, %s232
      %s247 = sphi 0, %s233
      %s251 = sphi 0, %s251
      %s253 = sphi 0, %s251
      %s254 = sphi 0, %s253
      %s268 = sphi 0, %s254
      %s272 = sphi 0, %s272
      %s274 = sphi 0, %s272
      %s275 = sphi 0, %s274
      %s289 = sphi 0, %s275
      %s295 = sphi 0, %s297
      %s298 = sphi 0, %s295
      %s299 = sphi 0, %s298
      %s315 = sphi 0, %s299
    $region4: #{tpu_custom_call.1} parent=1 // loop_header_branch
      %26 = sbr.rel (%p24) target = $region8
    $region5: #{tpu_custom_call.1} parent=1 // loop_body
      %s28 = ssub.s32 %s23, 1
      %s29 = ssub.s32 %s23, 2
      %s30 = sadd.s32 %s23, 1
      %s31 = ssub.s32 %s23, %s30
      %p32 = scmp.eq.s32.totalorder %s31, 0
      %s34 = sadd.s32 %s33, 1
      %s35 = scalar_select %p32, %s33, %s34
      %p38 = pneg %p32
      %p39 = scmp.eq.s32.totalorder %s23, 1
      %p40 = por %p38, %p39
      %p41 = scmp.ne.s32.totalorder %s33, %s36
      %p42 = scmp.eq.s32.totalorder %s23, 0
      %p43 = por %p41, %p42
      %p44 = scmp.ne.s32.totalorder %s33, %s36
      %p45 = scmp.eq.s32.totalorder %s28, 1
      %p46 = por %p44, %p45
      %p47 = scmp.ne.s32.totalorder %s36, %s37
      %p48 = scmp.eq.s32.totalorder %s28, 0
      %p49 = por %p47, %p48
      %p50 = scmp.ne.s32.totalorder %s36, %s37
      %p51 = scmp.eq.s32.totalorder %s29, 1
      %p52 = por %p50, %p51
      %p54 = scmp.ne.s32.totalorder %s37, %s53
      %p55 = scmp.eq.s32.totalorder %s29, 0
      %p56 = por %p54, %p55
      %s57 = ssub.s32 %s23, %s30
      %p58 = scmp.eq.s32.totalorder %s57, 0
      %s60 = sadd.s32 %s59, 1
      %s61 = scalar_select %p58, %s59, %s60
      %p64 = pneg %p58
      %p65 = scmp.eq.s32.totalorder %s23, 1
      %p66 = por %p64, %p65
      %p67 = scmp.ne.s32.totalorder %s59, %s62
      %p68 = scmp.eq.s32.totalorder %s23, 0
      %p69 = por %p67, %p68
      %p70 = scmp.ne.s32.totalorder %s59, %s62
      %p71 = scmp.eq.s32.totalorder %s28, 1
      %p72 = por %p70, %p71
      %p73 = scmp.ne.s32.totalorder %s62, %s63
      %p74 = scmp.eq.s32.totalorder %s28, 0
      %p75 = por %p73, %p74
      %p76 = scmp.ne.s32.totalorder %s62, %s63
      %p77 = scmp.eq.s32.totalorder %s29, 1
      %p78 = por %p76, %p77
      %p80 = scmp.ne.s32.totalorder %s63, %s79
      %p81 = scmp.eq.s32.totalorder %s29, 0
      %p82 = por %p80, %p81
      %s84 = sadd.s32 %s83, 1
      %p87 = scmp.eq.s32.totalorder %s23, 1
      %p88 = scmp.ne.s32.totalorder %s83, %s85
      %p89 = scmp.eq.s32.totalorder %s23, 0
      %p90 = por %p88, %p89
      %p91 = scmp.ne.s32.totalorder %s83, %s85
      %p92 = scmp.eq.s32.totalorder %s28, 1
      %p93 = por %p91, %p92
      %p94 = scmp.ne.s32.totalorder %s85, %s86
      %p95 = scmp.eq.s32.totalorder %s28, 0
      %p96 = por %p94, %p95
      %p97 = scmp.ne.s32.totalorder %s85, %s86
      %p98 = scmp.eq.s32.totalorder %s29, 1
      %p99 = por %p97, %p98
      %p101 = scmp.ne.s32.totalorder %s86, %s100
      %p102 = scmp.eq.s32.totalorder %s29, 0
      %p103 = por %p101, %p102
      %s105 = sadd.s32 %s104, 1
      %p108 = scmp.eq.s32.totalorder %s23, 1
      %p109 = scmp.ne.s32.totalorder %s104, %s106
      %p110 = scmp.eq.s32.totalorder %s23, 0
      %p111 = por %p109, %p110
      %p112 = scmp.ne.s32.totalorder %s104, %s106
      %p113 = scmp.eq.s32.totalorder %s28, 1
      %p114 = por %p112, %p113
      %p115 = scmp.ne.s32.totalorder %s106, %s107
      %p116 = scmp.eq.s32.totalorder %s28, 0
      %p117 = por %p115, %p116
      %p118 = scmp.ne.s32.totalorder %s106, %s107
      %p119 = scmp.eq.s32.totalorder %s29, 1
      %p120 = por %p118, %p119
      %p122 = scmp.ne.s32.totalorder %s107, %s121
      %p123 = scmp.eq.s32.totalorder %s29, 0
      %p124 = por %p122, %p123
      %s126 = sadd.s32 %s125, 1
      %p129 = scmp.eq.s32.totalorder %s23, 1
      %p130 = scmp.ne.s32.totalorder %s125, %s127
      %p131 = scmp.eq.s32.totalorder %s23, 0
      %p132 = por %p130, %p131
      %p133 = scmp.ne.s32.totalorder %s125, %s127
      %p134 = scmp.eq.s32.totalorder %s28, 1
      %p135 = por %p133, %p134
      %p136 = scmp.ne.s32.totalorder %s127, %s128
      %p137 = scmp.eq.s32.totalorder %s28, 0
      %p138 = por %p136, %p137
      %p139 = scmp.ne.s32.totalorder %s127, %s128
      %p140 = scmp.eq.s32.totalorder %s29, 1
      %p141 = por %p139, %p140
      %p143 = scmp.ne.s32.totalorder %s128, %s142
      %p144 = scmp.eq.s32.totalorder %s29, 0
      %p145 = por %p143, %p144
      %s147 = sadd.s32 %s146, 1
      %p150 = scmp.eq.s32.totalorder %s23, 1
      %p151 = scmp.ne.s32.totalorder %s146, %s148
      %p152 = scmp.eq.s32.totalorder %s23, 0
      %p153 = por %p151, %p152
      %p154 = scmp.ne.s32.totalorder %s146, %s148
      %p155 = scmp.eq.s32.totalorder %s28, 1
      %p156 = por %p154, %p155
      %p157 = scmp.ne.s32.totalorder %s148, %s149
      %p158 = scmp.eq.s32.totalorder %s28, 0
      %p159 = por %p157, %p158
      %p160 = scmp.ne.s32.totalorder %s148, %s149
      %p161 = scmp.eq.s32.totalorder %s29, 1
      %p162 = por %p160, %p161
      %p164 = scmp.ne.s32.totalorder %s149, %s163
      %p165 = scmp.eq.s32.totalorder %s29, 0
      %p166 = por %p164, %p165
      %s168 = sadd.s32 %s167, 1
      %p171 = scmp.eq.s32.totalorder %s23, 1
      %p172 = scmp.ne.s32.totalorder %s167, %s169
      %p173 = scmp.eq.s32.totalorder %s23, 0
      %p174 = por %p172, %p173
      %p175 = scmp.ne.s32.totalorder %s167, %s169
      %p176 = scmp.eq.s32.totalorder %s28, 1
      %p177 = por %p175, %p176
      %p178 = scmp.ne.s32.totalorder %s169, %s170
      %p179 = scmp.eq.s32.totalorder %s28, 0
      %p180 = por %p178, %p179
      %p181 = scmp.ne.s32.totalorder %s169, %s170
      %p182 = scmp.eq.s32.totalorder %s29, 1
      %p183 = por %p181, %p182
      %p185 = scmp.ne.s32.totalorder %s170, %s184
      %p186 = scmp.eq.s32.totalorder %s29, 0
      %p187 = por %p185, %p186
      %s189 = sadd.s32 %s188, 1
      %p192 = scmp.eq.s32.totalorder %s23, 1
      %p193 = scmp.ne.s32.totalorder %s188, %s190
      %p194 = scmp.eq.s32.totalorder %s23, 0
      %p195 = por %p193, %p194
      %p196 = scmp.ne.s32.totalorder %s188, %s190
      %p197 = scmp.eq.s32.totalorder %s28, 1
      %p198 = por %p196, %p197
      %p199 = scmp.ne.s32.totalorder %s190, %s191
      %p200 = scmp.eq.s32.totalorder %s28, 0
      %p201 = por %p199, %p200
      %p202 = scmp.ne.s32.totalorder %s190, %s191
      %p203 = scmp.eq.s32.totalorder %s29, 1
      %p204 = por %p202, %p203
      %p206 = scmp.ne.s32.totalorder %s191, %s205
      %p207 = scmp.eq.s32.totalorder %s29, 0
      %p208 = por %p206, %p207
      %s210 = sadd.s32 %s209, 1
      %p213 = scmp.eq.s32.totalorder %s23, 1
      %p214 = scmp.ne.s32.totalorder %s209, %s211
      %p215 = scmp.eq.s32.totalorder %s23, 0
      %p216 = por %p214, %p215
      %p217 = scmp.ne.s32.totalorder %s209, %s211
      %p218 = scmp.eq.s32.totalorder %s28, 1
      %p219 = por %p217, %p218
      %p220 = scmp.ne.s32.totalorder %s211, %s212
      %p221 = scmp.eq.s32.totalorder %s28, 0
      %p222 = por %p220, %p221
      %p223 = scmp.ne.s32.totalorder %s211, %s212
      %p224 = scmp.eq.s32.totalorder %s29, 1
      %p225 = por %p223, %p224
      %p227 = scmp.ne.s32.totalorder %s212, %s226
      %p228 = scmp.eq.s32.totalorder %s29, 0
      %p229 = por %p227, %p228
      %s231 = sadd.s32 %s230, 1
      %p234 = scmp.eq.s32.totalorder %s23, 1
      %p235 = scmp.ne.s32.totalorder %s230, %s232
      %p236 = scmp.eq.s32.totalorder %s23, 0
      %p237 = por %p235, %p236
      %p238 = scmp.ne.s32.totalorder %s230, %s232
      %p239 = scmp.eq.s32.totalorder %s28, 1
      %p240 = por %p238, %p239
      %p241 = scmp.ne.s32.totalorder %s232, %s233
      %p242 = scmp.eq.s32.totalorder %s28, 0
      %p243 = por %p241, %p242
      %p244 = scmp.ne.s32.totalorder %s232, %s233
      %p245 = scmp.eq.s32.totalorder %s29, 1
      %p246 = por %p244, %p245
      %p248 = scmp.ne.s32.totalorder %s233, %s247
      %p249 = scmp.eq.s32.totalorder %s29, 0
      %p250 = por %p248, %p249
      %s252 = sadd.s32 %s251, 1
      %p255 = scmp.eq.s32.totalorder %s23, 1
      %p256 = scmp.ne.s32.totalorder %s251, %s253
      %p257 = scmp.eq.s32.totalorder %s23, 0
      %p258 = por %p256, %p257
      %p259 = scmp.ne.s32.totalorder %s251, %s253
      %p260 = scmp.eq.s32.totalorder %s28, 1
      %p261 = por %p259, %p260
      %p262 = scmp.ne.s32.totalorder %s253, %s254
      %p263 = scmp.eq.s32.totalorder %s28, 0
      %p264 = por %p262, %p263
      %p265 = scmp.ne.s32.totalorder %s253, %s254
      %p266 = scmp.eq.s32.totalorder %s29, 1
      %p267 = por %p265, %p266
      %p269 = scmp.ne.s32.totalorder %s254, %s268
      %p270 = scmp.eq.s32.totalorder %s29, 0
      %p271 = por %p269, %p270
      %s273 = sadd.s32 %s272, 1
      %p276 = scmp.eq.s32.totalorder %s23, 1
      %p277 = scmp.ne.s32.totalorder %s272, %s274
      %p278 = scmp.eq.s32.totalorder %s23, 0
      %p279 = por %p277, %p278
      %p280 = scmp.ne.s32.totalorder %s272, %s274
      %p281 = scmp.eq.s32.totalorder %s28, 1
      %p282 = por %p280, %p281
      %p283 = scmp.ne.s32.totalorder %s274, %s275
      %p284 = scmp.eq.s32.totalorder %s28, 0
      %p285 = por %p283, %p284
      %p286 = scmp.ne.s32.totalorder %s274, %s275
      %p287 = scmp.eq.s32.totalorder %s29, 1
      %p288 = por %p286, %p287
      %p290 = scmp.ne.s32.totalorder %s275, %s289
      %p291 = scmp.eq.s32.totalorder %s29, 0
      %p292 = por %p290, %p291
      %s293 = ssub.s32 %s23, %s30
      %p294 = scmp.eq.s32.totalorder %s293, 0
      %s296 = sadd.s32 %s295, 1
      %s297 = scalar_select %p294, %s295, %s296
      %p300 = pneg %p294
      %p301 = scmp.eq.s32.totalorder %s23, 1
      %p302 = por %p300, %p301
      %p303 = scmp.ne.s32.totalorder %s295, %s298
      %p304 = scmp.eq.s32.totalorder %s23, 0
      %p305 = por %p303, %p304
      %p306 = scmp.ne.s32.totalorder %s295, %s298
      %p307 = scmp.eq.s32.totalorder %s28, 1
      %p308 = por %p306, %p307
      %p309 = scmp.ne.s32.totalorder %s298, %s299
      %p310 = scmp.eq.s32.totalorder %s28, 0
      %p311 = por %p309, %p310
      %p312 = scmp.ne.s32.totalorder %s298, %s299
      %p313 = scmp.eq.s32.totalorder %s29, 1
      %p314 = por %p312, %p313
      %p316 = scmp.ne.s32.totalorder %s299, %s315
      %p317 = scmp.eq.s32.totalorder %s29, 0
      %p318 = por %p316, %p317
      %p319 = scmp.le.s32.totalorder 1, %s23
      %p320 = scmp.lt.s32.totalorder %s23, 3
      %p321 = pnand %p319, %p320
      %p322 = pneg %p321
      // Predicated region
      $region9: #{tpu_custom_call.1} parent=5 // pred_check
        _
      $region10: #{tpu_custom_call.1} parent=5 // pred_check_branch
        %324 = sbr.rel (%p321) target = $region12
      $region11: #{tpu_custom_call.1} parent=5 // pred_region
        %s325 = ssub.s32 %s23, 1
        // Predicated region
        $region13: #{tpu_custom_call.1} parent=11 // pred_check
          %p326 = pneg %p96
        $region14: #{tpu_custom_call.1} parent=11 // pred_check_branch
          %328 = sbr.rel (%p326) target = $region16
        $region15: #{tpu_custom_call.1} parent=11 // pred_region
          _
        $region16: #{tpu_custom_call.1} parent=11 // pred_fallthru
          _
        // Predicated region
        $region17: #{tpu_custom_call.1} parent=11 // pred_check
          %p329 = pneg %p117
        $region18: #{tpu_custom_call.1} parent=11 // pred_check_branch
          %331 = sbr.rel (%p329) target = $region20
        $region19: #{tpu_custom_call.1} parent=11 // pred_region
          _
        $region20: #{tpu_custom_call.1} parent=11 // pred_fallthru
          _
        // Predicated region
        $region21: #{tpu_custom_call.1} parent=11 // pred_check
          %p332 = pneg %p138
        $region22: #{tpu_custom_call.1} parent=11 // pred_check_branch
          %334 = sbr.rel (%p332) target = $region24
        $region23: #{tpu_custom_call.1} parent=11 // pred_region
          _
        $region24: #{tpu_custom_call.1} parent=11 // pred_fallthru
          _
        // Predicated region
        $region25: #{tpu_custom_call.1} parent=11 // pred_check
          %p335 = pneg %p159
        $region26: #{tpu_custom_call.1} parent=11 // pred_check_branch
          %337 = sbr.rel (%p335) target = $region28
        $region27: #{tpu_custom_call.1} parent=11 // pred_region
          _
        $region28: #{tpu_custom_call.1} parent=11 // pred_fallthru
          _
        // Predicated region
        $region29: #{tpu_custom_call.1} parent=11 // pred_check
          %p338 = pneg %p180
        $region30: #{tpu_custom_call.1} parent=11 // pred_check_branch
          %340 = sbr.rel (%p338) target = $region32
        $region31: #{tpu_custom_call.1} parent=11 // pred_region
          _
        $region32: #{tpu_custom_call.1} parent=11 // pred_fallthru
          _
        // Predicated region
        $region33: #{tpu_custom_call.1} parent=11 // pred_check
          %p341 = pneg %p201
        $region34: #{tpu_custom_call.1} parent=11 // pred_check_branch
          %343 = sbr.rel (%p341) target = $region36
        $region35: #{tpu_custom_call.1} parent=11 // pred_region
          _
        $region36: #{tpu_custom_call.1} parent=11 // pred_fallthru
          _
        // Predicated region
        $region37: #{tpu_custom_call.1} parent=11 // pred_check
          %p344 = pneg %p222
        $region38: #{tpu_custom_call.1} parent=11 // pred_check_branch
          %346 = sbr.rel (%p344) target = $region40
        $region39: #{tpu_custom_call.1} parent=11 // pred_region
          _
        $region40: #{tpu_custom_call.1} parent=11 // pred_fallthru
          _
        // Predicated region
        $region41: #{tpu_custom_call.1} parent=11 // pred_check
          %p347 = pneg %p243
        $region42: #{tpu_custom_call.1} parent=11 // pred_check_branch
          %349 = sbr.rel (%p347) target = $region44
        $region43: #{tpu_custom_call.1} parent=11 // pred_region
          _
        $region44: #{tpu_custom_call.1} parent=11 // pred_fallthru
          _
        // Predicated region
        $region45: #{tpu_custom_call.1} parent=11 // pred_check
          %p350 = pneg %p264
        $region46: #{tpu_custom_call.1} parent=11 // pred_check_branch
          %352 = sbr.rel (%p350) target = $region48
        $region47: #{tpu_custom_call.1} parent=11 // pred_region
          _
        $region48: #{tpu_custom_call.1} parent=11 // pred_fallthru
          _
        // Predicated region
        $region49: #{tpu_custom_call.1} parent=11 // pred_check
          %p353 = pneg %p285
        $region50: #{tpu_custom_call.1} parent=11 // pred_check_branch
          %355 = sbr.rel (%p353) target = $region52
        $region51: #{tpu_custom_call.1} parent=11 // pred_region
          _
        $region52: #{tpu_custom_call.1} parent=11 // pred_fallthru
          _
      $region12: #{tpu_custom_call.1} parent=5 // pred_fallthru
        _
      %p356 = scmp.lt.s32.totalorder %s23, 2
      // Predicated region
      $region53: #{tpu_custom_call.1} parent=5 // pred_check
        %p357 = pneg %p356
      $region54: #{tpu_custom_call.1} parent=5 // pred_check_branch
        %359 = sbr.rel (%p357) target = $region56
      $region55: #{tpu_custom_call.1} parent=5 // pred_region
        // Predicated region
        $region57: #{tpu_custom_call.1} parent=55 // pred_check
          %p360 = pneg %p43
        $region58: #{tpu_custom_call.1} parent=55 // pred_check_branch
          %362 = sbr.rel (%p360) target = $region60
        $region59: #{tpu_custom_call.1} parent=55 // pred_region
          %s363 = smul.u32 16, %s23
          %p364 = scmp.lt.s32.totalorder %s363, 31
          %s365 = scalar_select %p364, %s363, 31
          %s366 = smul.addr %s365, 8
          %s367 = scalar_lea.vmem %s0, %s366
          %s368 = smul.u32 16, %s23
        $region60: #{tpu_custom_call.1} parent=55 // pred_fallthru
          _
        // Predicated region
        $region61: #{tpu_custom_call.1} parent=55 // pred_check
          %p369 = pneg %p69
        $region62: #{tpu_custom_call.1} parent=55 // pred_check_branch
          %371 = sbr.rel (%p369) target = $region64
        $region63: #{tpu_custom_call.1} parent=55 // pred_region
          %s372 = smul.u32 16, %s23
          %p373 = scmp.lt.s32.totalorder %s372, 31
          %s374 = scalar_select %p373, %s372, 31
          %s375 = smul.addr %s374, 8
          %s376 = scalar_lea.vmem %s1, %s375
          %s377 = smul.u32 16, %s23
        $region64: #{tpu_custom_call.1} parent=55 // pred_fallthru
          _
      $region56: #{tpu_custom_call.1} parent=5 // pred_fallthru
        _
      %p378 = scmp.le.s32.totalorder 1, %s23
      %p379 = scmp.lt.s32.totalorder %s23, 3
      %p380 = pnand %p378, %p379
      %p381 = pneg %p380
      // Predicated region
      $region65: #{tpu_custom_call.1} parent=5 // pred_check
        _
      $region66: #{tpu_custom_call.1} parent=5 // pred_check_branch
        %383 = sbr.rel (%p380) target = $region68
      $region67: #{tpu_custom_call.1} parent=5 // pred_region
        %s384 = ssub.s32 %s23, 1
        %s385 = smul.u32 16, %s28
        %p386 = scmp.lt.s32.totalorder %s385, 31
        %s387 = scalar_select %p386, %s385, 31
        %s388 = smul.addr %s387, 8
        %s389 = scalar_lea.vmem %s0, %s388
        %p390 = pneg %p49
        %p391 = pneg %p46
        %s392 = smul.u32 16, %s28
        %p393 = scmp.lt.s32.totalorder %s392, 31
        %s394 = scalar_select %p393, %s392, 31
        %s395 = smul.addr %s394, 8
        %s396 = scalar_lea.vmem %s1, %s395
        %p397 = pneg %p75
        %p398 = pneg %p72
        %p399 = pneg %p96
        %p400 = pneg %p93
        %p401 = pneg %p117
        %p402 = pneg %p114
        %p403 = pneg %p138
        %p404 = pneg %p135
        %p405 = pneg %p159
        %p406 = pneg %p156
        %p407 = pneg %p180
        %p408 = pneg %p177
        %p409 = pneg %p201
        %p410 = pneg %p198
        %p411 = pneg %p222
        %p412 = pneg %p219
        %p413 = pneg %p243
        %p414 = pneg %p240
        %p415 = pneg %p264
        %p416 = pneg %p261
        %p417 = pneg %p285
        %p418 = pneg %p282
        %p419 = pneg %p311
        %p420 = pneg %p308
        %s421 = sand.u32 %s298, 1
        %s422 = scalar_lea.sflag [#allocation5], %s421
        %s423 = sand.u32 %s298, 1
        %s424 = scalar_lea.vmem [#allocation4], %s423
        %s425 = smul.u32 16, %s28
        %p426 = scmp.lt.s32.totalorder %s425, 31
        %s427 = scalar_select %p426, %s425, 31
        %s428 = smul.addr %s427, 8
        %s429 = scalar_lea.vmem %s0, %s428
        %s430 = smul.u32 16, %s28
        %s431 = smul.u32 16, %s28
        %p432 = scmp.lt.s32.totalorder %s431, 31
        %s433 = scalar_select %p432, %s431, 31
        %s434 = smul.addr %s433, 8
        %s435 = scalar_lea.vmem %s1, %s434
        %s436 = smul.u32 16, %s28
        %v438 = vld [vmem:[%s429] sm:$0xff]
        %v439 = vld [vmem:[%s429 + $0x8] sm:$0xff]
        %v440 = vld [vmem:[%s429 + $0x10] sm:$0xff]
        %v441 = vld [vmem:[%s429 + $0x18] sm:$0xff]
        %v442 = vld [vmem:[%s429 + $0x20] sm:$0xff]
        %v443 = vld [vmem:[%s429 + $0x28] sm:$0xff]
        %v444 = vld [vmem:[%s429 + $0x30] sm:$0xff]
        %v445 = vld [vmem:[%s429 + $0x38] sm:$0xff]
        %v446 = vld [vmem:[%s429 + $0x40] sm:$0xff]
        %v447 = vld [vmem:[%s429 + $0x48] sm:$0xff]
        %v448 = vld [vmem:[%s429 + $0x50] sm:$0xff]
        %v449 = vld [vmem:[%s429 + $0x58] sm:$0xff]
        %v450 = vld [vmem:[%s429 + $0x60] sm:$0xff]
        %v451 = vld [vmem:[%s429 + $0x68] sm:$0xff]
        %v452 = vld [vmem:[%s429 + $0x70] sm:$0xff]
        %v453 = vld [vmem:[%s429 + $0x78] sm:$0xff]
        %v454 = vld [vmem:[%s435] sm:$0xff]
        %v455 = vld [vmem:[%s435 + $0x8] sm:$0xff]
        %v456 = vld [vmem:[%s435 + $0x10] sm:$0xff]
        %v457 = vld [vmem:[%s435 + $0x18] sm:$0xff]
        %v458 = vld [vmem:[%s435 + $0x20] sm:$0xff]
        %v459 = vld [vmem:[%s435 + $0x28] sm:$0xff]
        %v460 = vld [vmem:[%s435 + $0x30] sm:$0xff]
        %v461 = vld [vmem:[%s435 + $0x38] sm:$0xff]
        %v462 = vld [vmem:[%s435 + $0x40] sm:$0xff]
        %v463 = vld [vmem:[%s435 + $0x48] sm:$0xff]
        %v464 = vld [vmem:[%s435 + $0x50] sm:$0xff]
        %v465 = vld [vmem:[%s435 + $0x58] sm:$0xff]
        %v466 = vld [vmem:[%s435 + $0x60] sm:$0xff]
        %v467 = vld [vmem:[%s435 + $0x68] sm:$0xff]
        %v468 = vld [vmem:[%s435 + $0x70] sm:$0xff]
        %v469 = vld [vmem:[%s435 + $0x78] sm:$0xff]
        %470 = vrot.lane.b32.xlu0 %v438, 127
        %v471 = vpop.permute.xlu0 %470
        %472 = vrot.lane.b32.xlu0 %v439, 127
        %v473 = vpop.permute.xlu0 %472
        %474 = vrot.lane.b32.xlu0 %v440, 127
        %v475 = vpop.permute.xlu0 %474
        %476 = vrot.lane.b32.xlu0 %v441, 127
        %v477 = vpop.permute.xlu0 %476
        %478 = vrot.lane.b32.xlu0 %v442, 127
        %v479 = vpop.permute.xlu0 %478
        %480 = vrot.lane.b32.xlu0 %v443, 127
        %v481 = vpop.permute.xlu0 %480
        %482 = vrot.lane.b32.xlu0 %v444, 127
        %v483 = vpop.permute.xlu0 %482
        %484 = vrot.lane.b32.xlu0 %v445, 127
        %v485 = vpop.permute.xlu0 %484
        %486 = vrot.lane.b32.xlu0 %v446, 127
        %v487 = vpop.permute.xlu0 %486
        %488 = vrot.lane.b32.xlu0 %v447, 127
        %v489 = vpop.permute.xlu0 %488
        %490 = vrot.lane.b32.xlu0 %v448, 127
        %v491 = vpop.permute.xlu0 %490
        %492 = vrot.lane.b32.xlu0 %v449, 127
        %v493 = vpop.permute.xlu0 %492
        %494 = vrot.lane.b32.xlu0 %v450, 127
        %v495 = vpop.permute.xlu0 %494
        %496 = vrot.lane.b32.xlu0 %v451, 127
        %v497 = vpop.permute.xlu0 %496
        %498 = vrot.lane.b32.xlu0 %v452, 127
        %v499 = vpop.permute.xlu0 %498
        %500 = vrot.lane.b32.xlu0 %v453, 127
        %v501 = vpop.permute.xlu0 %500
        %502 = vrot.lane.b32.xlu0 %v438, 126
        %v503 = vpop.permute.xlu0 %502
        %504 = vrot.lane.b32.xlu0 %v439, 126
        %v505 = vpop.permute.xlu0 %504
        %506 = vrot.lane.b32.xlu0 %v440, 126
        %v507 = vpop.permute.xlu0 %506
        %508 = vrot.lane.b32.xlu0 %v441, 126
        %v509 = vpop.permute.xlu0 %508
        %510 = vrot.lane.b32.xlu0 %v442, 126
        %v511 = vpop.permute.xlu0 %510
        %512 = vrot.lane.b32.xlu0 %v443, 126
        %v513 = vpop.permute.xlu0 %512
        %514 = vrot.lane.b32.xlu0 %v444, 126
        %v515 = vpop.permute.xlu0 %514
        %516 = vrot.lane.b32.xlu0 %v445, 126
        %v517 = vpop.permute.xlu0 %516
        %518 = vrot.lane.b32.xlu0 %v446, 126
        %v519 = vpop.permute.xlu0 %518
        %520 = vrot.lane.b32.xlu0 %v447, 126
        %v521 = vpop.permute.xlu0 %520
        %522 = vrot.lane.b32.xlu0 %v448, 126
        %v523 = vpop.permute.xlu0 %522
        %524 = vrot.lane.b32.xlu0 %v449, 126
        %v525 = vpop.permute.xlu0 %524
        %526 = vrot.lane.b32.xlu0 %v450, 126
        %v527 = vpop.permute.xlu0 %526
        %528 = vrot.lane.b32.xlu0 %v451, 126
        %v529 = vpop.permute.xlu0 %528
        %530 = vrot.lane.b32.xlu0 %v452, 126
        %v531 = vpop.permute.xlu0 %530
        %532 = vrot.lane.b32.xlu0 %v453, 126
        %v533 = vpop.permute.xlu0 %532
        %v534 = vlaneseq
        %v535 = vand.u32 %v534, 127
        %536 = vset.pattern.permute.xlu0 0
        %537 = vperm.xlu0 %536, %v438
        %v538 = vpop.permute.xlu0 %537
        %539 = vset.pattern.permute.xlu0 0
        %540 = vperm.xlu0 %539, %v439
        %v541 = vpop.permute.xlu0 %540
        %542 = vset.pattern.permute.xlu0 0
        %543 = vperm.xlu0 %542, %v440
        %v544 = vpop.permute.xlu0 %543
        %545 = vset.pattern.permute.xlu0 0
        %546 = vperm.xlu0 %545, %v441
        %v547 = vpop.permute.xlu0 %546
        %548 = vset.pattern.permute.xlu0 0
        %549 = vperm.xlu0 %548, %v442
        %v550 = vpop.permute.xlu0 %549
        %551 = vset.pattern.permute.xlu0 0
        %552 = vperm.xlu0 %551, %v443
        %v553 = vpop.permute.xlu0 %552
        %554 = vset.pattern.permute.xlu0 0
        %555 = vperm.xlu0 %554, %v444
        %v556 = vpop.permute.xlu0 %555
        %557 = vset.pattern.permute.xlu0 0
        %558 = vperm.xlu0 %557, %v445
        %v559 = vpop.permute.xlu0 %558
        %560 = vset.pattern.permute.xlu0 0
        %561 = vperm.xlu0 %560, %v446
        %v562 = vpop.permute.xlu0 %561
        %563 = vset.pattern.permute.xlu0 0
        %564 = vperm.xlu0 %563, %v447
        %v565 = vpop.permute.xlu0 %564
        %566 = vset.pattern.permute.xlu0 0
        %567 = vperm.xlu0 %566, %v448
        %v568 = vpop.permute.xlu0 %567
        %569 = vset.pattern.permute.xlu0 0
        %570 = vperm.xlu0 %569, %v449
        %v571 = vpop.permute.xlu0 %570
        %572 = vset.pattern.permute.xlu0 0
        %573 = vperm.xlu0 %572, %v450
        %v574 = vpop.permute.xlu0 %573
        %575 = vset.pattern.permute.xlu0 0
        %576 = vperm.xlu0 %575, %v451
        %v577 = vpop.permute.xlu0 %576
        %578 = vset.pattern.permute.xlu0 0
        %579 = vperm.xlu0 %578, %v452
        %v580 = vpop.permute.xlu0 %579
        %581 = vset.pattern.permute.xlu0 0
        %582 = vperm.xlu0 %581, %v453
        %v583 = vpop.permute.xlu0 %582
        %584 = vset.pattern.permute.xlu0 0
        %585 = vperm.xlu0 %584, %v471
        %v586 = vpop.permute.xlu0 %585
        %587 = vset.pattern.permute.xlu0 0
        %588 = vperm.xlu0 %587, %v473
        %v589 = vpop.permute.xlu0 %588
        %590 = vset.pattern.permute.xlu0 0
        %591 = vperm.xlu0 %590, %v475
        %v592 = vpop.permute.xlu0 %591
        %593 = vset.pattern.permute.xlu0 0
        %594 = vperm.xlu0 %593, %v477
        %v595 = vpop.permute.xlu0 %594
        %596 = vset.pattern.permute.xlu0 0
        %597 = vperm.xlu0 %596, %v479
        %v598 = vpop.permute.xlu0 %597
        %599 = vset.pattern.permute.xlu0 0
        %600 = vperm.xlu0 %599, %v481
        %v601 = vpop.permute.xlu0 %600
        %602 = vset.pattern.permute.xlu0 0
        %603 = vperm.xlu0 %602, %v483
        %v604 = vpop.permute.xlu0 %603
        %605 = vset.pattern.permute.xlu0 0
        %606 = vperm.xlu0 %605, %v485
        %v607 = vpop.permute.xlu0 %606
        %608 = vset.pattern.permute.xlu0 0
        %609 = vperm.xlu0 %608, %v487
        %v610 = vpop.permute.xlu0 %609
        %611 = vset.pattern.permute.xlu0 0
        %612 = vperm.xlu0 %611, %v489
        %v613 = vpop.permute.xlu0 %612
        %614 = vset.pattern.permute.xlu0 0
        %615 = vperm.xlu0 %614, %v491
        %v616 = vpop.permute.xlu0 %615
        %617 = vset.pattern.permute.xlu0 0
        %618 = vperm.xlu0 %617, %v493
        %v619 = vpop.permute.xlu0 %618
        %620 = vset.pattern.permute.xlu0 0
        %621 = vperm.xlu0 %620, %v495
        %v622 = vpop.permute.xlu0 %621
        %623 = vset.pattern.permute.xlu0 0
        %624 = vperm.xlu0 %623, %v497
        %v625 = vpop.permute.xlu0 %624
        %626 = vset.pattern.permute.xlu0 0
        %627 = vperm.xlu0 %626, %v499
        %v628 = vpop.permute.xlu0 %627
        %629 = vset.pattern.permute.xlu0 0
        %630 = vperm.xlu0 %629, %v501
        %v631 = vpop.permute.xlu0 %630
        %632 = vset.pattern.permute.xlu0 0
        %633 = vperm.xlu0 %632, %v503
        %v634 = vpop.permute.xlu0 %633
        %635 = vset.pattern.permute.xlu0 0
        %636 = vperm.xlu0 %635, %v505
        %v637 = vpop.permute.xlu0 %636
        %638 = vset.pattern.permute.xlu0 0
        %639 = vperm.xlu0 %638, %v507
        %v640 = vpop.permute.xlu0 %639
        %641 = vset.pattern.permute.xlu0 0
        %642 = vperm.xlu0 %641, %v509
        %v643 = vpop.permute.xlu0 %642
        %644 = vset.pattern.permute.xlu0 0
        %645 = vperm.xlu0 %644, %v511
        %v646 = vpop.permute.xlu0 %645
        %647 = vset.pattern.permute.xlu0 0
        %648 = vperm.xlu0 %647, %v513
        %v649 = vpop.permute.xlu0 %648
        %650 = vset.pattern.permute.xlu0 0
        %651 = vperm.xlu0 %650, %v515
        %v652 = vpop.permute.xlu0 %651
        %653 = vset.pattern.permute.xlu0 0
        %654 = vperm.xlu0 %653, %v517
        %v655 = vpop.permute.xlu0 %654
        %656 = vset.pattern.permute.xlu0 0
        %657 = vperm.xlu0 %656, %v519
        %v658 = vpop.permute.xlu0 %657
        %659 = vset.pattern.permute.xlu0 0
        %660 = vperm.xlu0 %659, %v521
        %v661 = vpop.permute.xlu0 %660
        %662 = vset.pattern.permute.xlu0 0
        %663 = vperm.xlu0 %662, %v523
        %v664 = vpop.permute.xlu0 %663
        %665 = vset.pattern.permute.xlu0 0
        %666 = vperm.xlu0 %665, %v525
        %v667 = vpop.permute.xlu0 %666
        %668 = vset.pattern.permute.xlu0 0
        %669 = vperm.xlu0 %668, %v527
        %v670 = vpop.permute.xlu0 %669
        %671 = vset.pattern.permute.xlu0 0
        %672 = vperm.xlu0 %671, %v529
        %v673 = vpop.permute.xlu0 %672
        %674 = vset.pattern.permute.xlu0 0
        %675 = vperm.xlu0 %674, %v531
        %v676 = vpop.permute.xlu0 %675
        %677 = vset.pattern.permute.xlu0 0
        %678 = vperm.xlu0 %677, %v533
        %v679 = vpop.permute.xlu0 %678
        %vm680 = vcmp.eq.s32.totalorder %v535, %v538
        %vm681 = vcmp.eq.s32.totalorder %v535, %v541
        %vm682 = vcmp.eq.s32.totalorder %v535, %v544
        %vm683 = vcmp.eq.s32.totalorder %v535, %v547
        %vm684 = vcmp.eq.s32.totalorder %v535, %v550
        %vm685 = vcmp.eq.s32.totalorder %v535, %v553
        %vm686 = vcmp.eq.s32.totalorder %v535, %v556
        %vm687 = vcmp.eq.s32.totalorder %v535, %v559
        %vm688 = vcmp.eq.s32.totalorder %v535, %v562
        %vm689 = vcmp.eq.s32.totalorder %v535, %v565
        %vm690 = vcmp.eq.s32.totalorder %v535, %v568
        %vm691 = vcmp.eq.s32.totalorder %v535, %v571
        %vm692 = vcmp.eq.s32.totalorder %v535, %v574
        %vm693 = vcmp.eq.s32.totalorder %v535, %v577
        %vm694 = vcmp.eq.s32.totalorder %v535, %v580
        %vm695 = vcmp.eq.s32.totalorder %v535, %v583
        %vm696 = vcmp.eq.s32.totalorder %v535, %v586
        %vm697 = vcmp.eq.s32.totalorder %v535, %v589
        %vm698 = vcmp.eq.s32.totalorder %v535, %v592
        %vm699 = vcmp.eq.s32.totalorder %v535, %v595
        %vm700 = vcmp.eq.s32.totalorder %v535, %v598
        %vm701 = vcmp.eq.s32.totalorder %v535, %v601
        %vm702 = vcmp.eq.s32.totalorder %v535, %v604
        %vm703 = vcmp.eq.s32.totalorder %v535, %v607
        %vm704 = vcmp.eq.s32.totalorder %v535, %v610
        %vm705 = vcmp.eq.s32.totalorder %v535, %v613
        %vm706 = vcmp.eq.s32.totalorder %v535, %v616
        %vm707 = vcmp.eq.s32.totalorder %v535, %v619
        %vm708 = vcmp.eq.s32.totalorder %v535, %v622
        %vm709 = vcmp.eq.s32.totalorder %v535, %v625
        %vm710 = vcmp.eq.s32.totalorder %v535, %v628
        %vm711 = vcmp.eq.s32.totalorder %v535, %v631
        %vm712 = vcmp.eq.s32.totalorder %v535, %v634
        %vm713 = vcmp.eq.s32.totalorder %v535, %v637
        %vm714 = vcmp.eq.s32.totalorder %v535, %v640
        %vm715 = vcmp.eq.s32.totalorder %v535, %v643
        %vm716 = vcmp.eq.s32.totalorder %v535, %v646
        %vm717 = vcmp.eq.s32.totalorder %v535, %v649
        %vm718 = vcmp.eq.s32.totalorder %v535, %v652
        %vm719 = vcmp.eq.s32.totalorder %v535, %v655
        %vm720 = vcmp.eq.s32.totalorder %v535, %v658
        %vm721 = vcmp.eq.s32.totalorder %v535, %v661
        %vm722 = vcmp.eq.s32.totalorder %v535, %v664
        %vm723 = vcmp.eq.s32.totalorder %v535, %v667
        %vm724 = vcmp.eq.s32.totalorder %v535, %v670
        %vm725 = vcmp.eq.s32.totalorder %v535, %v673
        %vm726 = vcmp.eq.s32.totalorder %v535, %v676
        %vm727 = vcmp.eq.s32.totalorder %v535, %v679
        %v728 = vsel %vm680, 1, 0
        %v729 = vsel %vm681, 1, 0
        %v730 = vsel %vm682, 1, 0
        %v731 = vsel %vm683, 1, 0
        %v732 = vsel %vm684, 1, 0
        %v733 = vsel %vm685, 1, 0
        %v734 = vsel %vm686, 1, 0
        %v735 = vsel %vm687, 1, 0
        %v736 = vsel %vm688, 1, 0
        %v737 = vsel %vm689, 1, 0
        %v738 = vsel %vm690, 1, 0
        %v739 = vsel %vm691, 1, 0
        %v740 = vsel %vm692, 1, 0
        %v741 = vsel %vm693, 1, 0
        %v742 = vsel %vm694, 1, 0
        %v743 = vsel %vm695, 1, 0
        %v744 = vsel %vm696, 1, 0
        %v745 = vsel %vm697, 1, 0
        %v746 = vsel %vm698, 1, 0
        %v747 = vsel %vm699, 1, 0
        %v748 = vsel %vm700, 1, 0
        %v749 = vsel %vm701, 1, 0
        %v750 = vsel %vm702, 1, 0
        %v751 = vsel %vm703, 1, 0
        %v752 = vsel %vm704, 1, 0
        %v753 = vsel %vm705, 1, 0
        %v754 = vsel %vm706, 1, 0
        %v755 = vsel %vm707, 1, 0
        %v756 = vsel %vm708, 1, 0
        %v757 = vsel %vm709, 1, 0
        %v758 = vsel %vm710, 1, 0
        %v759 = vsel %vm711, 1, 0
        %v760 = vsel %vm712, 1, 0
        %v761 = vsel %vm713, 1, 0
        %v762 = vsel %vm714, 1, 0
        %v763 = vsel %vm715, 1, 0
        %v764 = vsel %vm716, 1, 0
        %v765 = vsel %vm717, 1, 0
        %v766 = vsel %vm718, 1, 0
        %v767 = vsel %vm719, 1, 0
        %v768 = vsel %vm720, 1, 0
        %v769 = vsel %vm721, 1, 0
        %v770 = vsel %vm722, 1, 0
        %v771 = vsel %vm723, 1, 0
        %v772 = vsel %vm724, 1, 0
        %v773 = vsel %vm725, 1, 0
        %v774 = vsel %vm726, 1, 0
        %v775 = vsel %vm727, 1, 0
        %v776 = vcvt.s32.f32 %v728
        %v777 = vcvt.s32.f32 %v729
        %v778 = vcvt.s32.f32 %v730
        %v779 = vcvt.s32.f32 %v731
        %v780 = vcvt.s32.f32 %v732
        %v781 = vcvt.s32.f32 %v733
        %v782 = vcvt.s32.f32 %v734
        %v783 = vcvt.s32.f32 %v735
        %v784 = vcvt.s32.f32 %v736
        %v785 = vcvt.s32.f32 %v737
        %v786 = vcvt.s32.f32 %v738
        %v787 = vcvt.s32.f32 %v739
        %v788 = vcvt.s32.f32 %v740
        %v789 = vcvt.s32.f32 %v741
        %v790 = vcvt.s32.f32 %v742
        %v791 = vcvt.s32.f32 %v743
        %v792 = vcvt.s32.f32 %v744
        %v793 = vcvt.s32.f32 %v745
        %v794 = vcvt.s32.f32 %v746
        %v795 = vcvt.s32.f32 %v747
        %v796 = vcvt.s32.f32 %v748
        %v797 = vcvt.s32.f32 %v749
        %v798 = vcvt.s32.f32 %v750
        %v799 = vcvt.s32.f32 %v751
        %v800 = vcvt.s32.f32 %v752
        %v801 = vcvt.s32.f32 %v753
        %v802 = vcvt.s32.f32 %v754
        %v803 = vcvt.s32.f32 %v755
        %v804 = vcvt.s32.f32 %v756
        %v805 = vcvt.s32.f32 %v757
        %v806 = vcvt.s32.f32 %v758
        %v807 = vcvt.s32.f32 %v759
        %v808 = vcvt.s32.f32 %v760
        %v809 = vcvt.s32.f32 %v761
        %v810 = vcvt.s32.f32 %v762
        %v811 = vcvt.s32.f32 %v763
        %v812 = vcvt.s32.f32 %v764
        %v813 = vcvt.s32.f32 %v765
        %v814 = vcvt.s32.f32 %v766
        %v815 = vcvt.s32.f32 %v767
        %v816 = vcvt.s32.f32 %v768
        %v817 = vcvt.s32.f32 %v769
        %v818 = vcvt.s32.f32 %v770
        %v819 = vcvt.s32.f32 %v771
        %v820 = vcvt.s32.f32 %v772
        %v821 = vcvt.s32.f32 %v773
        %v822 = vcvt.s32.f32 %v774
        %v823 = vcvt.s32.f32 %v775
        %v824 = vpack.c.bf16 %v777, %v776
        %v825 = vpack.c.bf16 %v779, %v778
        %v826 = vpack.c.bf16 %v781, %v780
        %v827 = vpack.c.bf16 %v783, %v782
        %v828 = vpack.c.bf16 %v785, %v784
        %v829 = vpack.c.bf16 %v787, %v786
        %v830 = vpack.c.bf16 %v789, %v788
        %v831 = vpack.c.bf16 %v791, %v790
        %v832 = vpack.c.bf16 %v793, %v792
        %v833 = vpack.c.bf16 %v795, %v794
        %v834 = vpack.c.bf16 %v797, %v796
        %v835 = vpack.c.bf16 %v799, %v798
        %v836 = vpack.c.bf16 %v801, %v800
        %v837 = vpack.c.bf16 %v803, %v802
        %v838 = vpack.c.bf16 %v805, %v804
        %v839 = vpack.c.bf16 %v807, %v806
        %v840 = vpack.c.bf16 %v809, %v808
        %v841 = vpack.c.bf16 %v811, %v810
        %v842 = vpack.c.bf16 %v813, %v812
        %v843 = vpack.c.bf16 %v815, %v814
        %v844 = vpack.c.bf16 %v817, %v816
        %v845 = vpack.c.bf16 %v819, %v818
        %v846 = vpack.c.bf16 %v821, %v820
        %v847 = vpack.c.bf16 %v823, %v822
        %v848 = vld [vmem:[%s2] sm:$0xf]
        %v849 = vld [vmem:[%s2 + $0x4] sm:$0xf]
        %v850 = vld [vmem:[%s2 + $0x8] sm:$0xf]
        %v851 = vld [vmem:[%s2 + $0xc] sm:$0xf]
        %v852 = vld [vmem:[%s2 + $0x10] sm:$0xf]
        %v853 = vld [vmem:[%s2 + $0x14] sm:$0xf]
        %v854 = vld [vmem:[%s2 + $0x18] sm:$0xf]
        %v855 = vld [vmem:[%s2 + $0x1c] sm:$0x3]
        %v864 = vunpack.c.l.b16 %v848
        %v865 = vunpack.c.l.b16 %v849
        %v866 = vunpack.c.l.b16 %v850
        %v867 = vunpack.c.l.b16 %v851
        %v868 = vunpack.c.l.b16 %v852
        %v869 = vunpack.c.l.b16 %v853
        %v870 = vunpack.c.l.b16 %v854
        %v871 = vunpack.c.l.b16 %v855
        %v872 = vpack.c.b16 %v865, %v864
        %v873 = vpack.c.b16 %v867, %v866
        %v874 = vpack.c.b16 %v869, %v868
        %v875 = vpack.c.b16 %v871, %v870
        %vm879 = vcmask 490496
        %v881 = vsel %vm879, %v824, 0
        %v884 = vsel %vm879, %v825, 0
        %v887 = vsel %vm879, %v826, 0
        %v890 = vsel %vm879, %v827, 0
        %v893 = vsel %vm879, %v828, 0
        %v896 = vsel %vm879, %v829, 0
        %v899 = vsel %vm879, %v830, 0
        %v902 = vsel %vm879, %v831, 0
        %v905 = vsel %vm879, %v832, 0
        %v908 = vsel %vm879, %v833, 0
        %v911 = vsel %vm879, %v834, 0
        %v914 = vsel %vm879, %v835, 0
        %v917 = vsel %vm879, %v836, 0
        %v920 = vsel %vm879, %v837, 0
        %v923 = vsel %vm879, %v838, 0
        %v926 = vsel %vm879, %v839, 0
        %v929 = vsel %vm879, %v840, 0
        %v932 = vsel %vm879, %v841, 0
        %v935 = vsel %vm879, %v842, 0
        %v938 = vsel %vm879, %v843, 0
        %v941 = vsel %vm879, %v844, 0
        %v944 = vsel %vm879, %v845, 0
        %v947 = vsel %vm879, %v846, 0
        %v950 = vsel %vm879, %v847, 0
        %vm952 = vcmask 1045504
        %v954 = vsel %vm952, %v875, 0
        %956 = vmatprep.subr.bf16.mxu0 0
        %957 = vmatpush1.bf16.msra.mxu0 %v872
        %958 = vmatprep.subr.bf16.mxu0 0
        %959 = vmatpush1.bf16.msra.mxu0 %v873
        %960 = vmatprep.subr.bf16.mxu0 0
        %961 = vmatpush1.bf16.msra.mxu0 %v874
        %962 = vmatprep.subr.bf16.mxu0 0
        %963 = vmatpush1.bf16.msra.mxu0 %v954
        %964 = vmatprep.subr.bf16.mxu0 0
        %965 = vmatpush1.bf16.msra.mxu0 0
        %966 = vmatprep.subr.bf16.mxu0 0
        %967 = vmatpush1.bf16.msra.mxu0 0
        %968 = vmatprep.subr.bf16.mxu0 0
        %969 = vmatpush1.bf16.msra.mxu0 0
        %970 = vmatprep.subr.bf16.mxu0 0
        %971 = vmatpush1.bf16.msra.mxu0 0
        %972 = vmatprep.subr.bf16.mxu0 0
        %973 = vmatpush1.bf16.msra.mxu0 0
        %974 = vmatprep.subr.bf16.mxu0 0
        %975 = vmatpush1.bf16.msra.mxu0 0
        %976 = vmatprep.subr.bf16.mxu0 0
        %977 = vmatpush1.bf16.msra.mxu0 0
        %978 = vmatprep.subr.bf16.mxu0 0
        %979 = vmatpush1.bf16.msra.mxu0 0
        %980 = vmatprep.subr.bf16.mxu0 0
        %981 = vmatpush1.bf16.msra.mxu0 0
        %982 = vmatprep.subr.bf16.mxu0 0
        %983 = vmatpush1.bf16.msra.mxu0 0
        %984 = vmatprep.subr.bf16.mxu0 0
        %985 = vmatpush1.bf16.msra.mxu0 0
        %986 = vmatprep.subr.bf16.mxu0 0
        %987 = vmatpush1.bf16.msra.mxu0 0
        %988 = vmatprep.mubr.bf16.mxu0 0
        %989 = vmatmul.mubr.bf16.gmra.mrb[0].mxu0 %v881
        %v990 = vpop.f32.mrb[0].mxu0
        %v991 = vadd.f32 0.0, %v990
        %v992 = vpop.f32.mrb[0].mxu0
        %v993 = vpop.f32.mrb[0].mxu0
        %v994 = vadd.f32 0.0, %v993
        %v995 = vpop.f32.mrb[0].mxu0
        %996 = vmatprep.mubr.bf16.mxu0 0
        %997 = vmatmul.mubr.bf16.gmra.mrb[0].mxu0 %v884
        %v998 = vpop.f32.mrb[0].mxu0
        %v999 = vadd.f32 0.0, %v998
        %v1000 = vpop.f32.mrb[0].mxu0
        %v1001 = vpop.f32.mrb[0].mxu0
        %v1002 = vadd.f32 0.0, %v1001
        %v1003 = vpop.f32.mrb[0].mxu0
        %1004 = vmatprep.mubr.bf16.mxu0 0
        %1005 = vmatmul.mubr.bf16.gmra.mrb[0].mxu0 %v887
        %v1006 = vpop.f32.mrb[0].mxu0
        %v1007 = vadd.f32 0.0, %v1006
        %v1008 = vpop.f32.mrb[0].mxu0
        %v1009 = vpop.f32.mrb[0].mxu0
        %v1010 = vadd.f32 0.0, %v1009
        %v1011 = vpop.f32.mrb[0].mxu0
        %1012 = vmatprep.mubr.bf16.mxu0 0
        %1013 = vmatmul.mubr.bf16.gmra.mrb[0].mxu0 %v890
        %v1014 = vpop.f32.mrb[0].mxu0
        %v1015 = vadd.f32 0.0, %v1014
        %v1016 = vpop.f32.mrb[0].mxu0
        %v1017 = vpop.f32.mrb[0].mxu0
        %v1018 = vadd.f32 0.0, %v1017
        %v1019 = vpop.f32.mrb[0].mxu0
        %1020 = vmatprep.mubr.bf16.mxu0 0
        %1021 = vmatmul.mubr.bf16.gmra.mrb[0].mxu0 %v893
        %v1022 = vpop.f32.mrb[0].mxu0
        %v1023 = vadd.f32 0.0, %v1022
        %v1024 = vpop.f32.mrb[0].mxu0
        %v1025 = vpop.f32.mrb[0].mxu0
        %v1026 = vadd.f32 0.0, %v1025
        %v1027 = vpop.f32.mrb[0].mxu0
        %1028 = vmatprep.mubr.bf16.mxu0 0
        %1029 = vmatmul.mubr.bf16.gmra.mrb[0].mxu0 %v896
        %v1030 = vpop.f32.mrb[0].mxu0
        %v1031 = vadd.f32 0.0, %v1030
        %v1032 = vpop.f32.mrb[0].mxu0
        %v1033 = vpop.f32.mrb[0].mxu0
        %v1034 = vadd.f32 0.0, %v1033
        %v1035 = vpop.f32.mrb[0].mxu0
        %1036 = vmatprep.mubr.bf16.mxu0 0
        %1037 = vmatmul.mubr.bf16.gmra.mrb[0].mxu0 %v899
        %v1038 = vpop.f32.mrb[0].mxu0
        %v1039 = vadd.f32 0.0, %v1038
        %v1040 = vpop.f32.mrb[0].mxu0
        %v1041 = vpop.f32.mrb[0].mxu0
        %v1042 = vadd.f32 0.0, %v1041
        %v1043 = vpop.f32.mrb[0].mxu0
        %1044 = vmatprep.mubr.bf16.mxu0 0
        %1045 = vmatmul.mubr.bf16.gmra.mrb[0].mxu0 %v902
        %v1046 = vpop.f32.mrb[0].mxu0
        %v1047 = vadd.f32 0.0, %v1046
        %v1048 = vpop.f32.mrb[0].mxu0
        %v1049 = vpop.f32.mrb[0].mxu0
        %v1050 = vadd.f32 0.0, %v1049
        %v1051 = vpop.f32.mrb[0].mxu0
        %1052 = vmatprep.mubr.bf16.mxu0 0
        %1053 = vmatmul.mubr.bf16.gmra.mrb[0].mxu0 %v905
        %v1054 = vpop.f32.mrb[0].mxu0
        %v1055 = vadd.f32 0.0, %v1054
        %v1056 = vpop.f32.mrb[0].mxu0
        %v1057 = vpop.f32.mrb[0].mxu0
        %v1058 = vadd.f32 0.0, %v1057
        %v1059 = vpop.f32.mrb[0].mxu0
        %1060 = vmatprep.mubr.bf16.mxu0 0
        %1061 = vmatmul.mubr.bf16.gmra.mrb[0].mxu0 %v908
        %v1062 = vpop.f32.mrb[0].mxu0
        %v1063 = vadd.f32 0.0, %v1062
        %v1064 = vpop.f32.mrb[0].mxu0
        %v1065 = vpop.f32.mrb[0].mxu0
        %v1066 = vadd.f32 0.0, %v1065
        %v1067 = vpop.f32.mrb[0].mxu0
        %1068 = vmatprep.mubr.bf16.mxu0 0
        %1069 = vmatmul.mubr.bf16.gmra.mrb[0].mxu0 %v911
        %v1070 = vpop.f32.mrb[0].mxu0
        %v1071 = vadd.f32 0.0, %v1070
        %v1072 = vpop.f32.mrb[0].mxu0
        %v1073 = vpop.f32.mrb[0].mxu0
        %v1074 = vadd.f32 0.0, %v1073
        %v1075 = vpop.f32.mrb[0].mxu0
        %1076 = vmatprep.mubr.bf16.mxu0 0
        %1077 = vmatmul.mubr.bf16.gmra.mrb[0].mxu0 %v914
        %v1078 = vpop.f32.mrb[0].mxu0
        %v1079 = vadd.f32 0.0, %v1078
        %v1080 = vpop.f32.mrb[0].mxu0
        %v1081 = vpop.f32.mrb[0].mxu0
        %v1082 = vadd.f32 0.0, %v1081
        %v1083 = vpop.f32.mrb[0].mxu0
        %1084 = vmatprep.mubr.bf16.mxu0 0
        %1085 = vmatmul.mubr.bf16.gmra.mrb[0].mxu0 %v917
        %v1086 = vpop.f32.mrb[0].mxu0
        %v1087 = vadd.f32 0.0, %v1086
        %v1088 = vpop.f32.mrb[0].mxu0
        %v1089 = vpop.f32.mrb[0].mxu0
        %v1090 = vadd.f32 0.0, %v1089
        %v1091 = vpop.f32.mrb[0].mxu0
        %1092 = vmatprep.mubr.bf16.mxu0 0
        %1093 = vmatmul.mubr.bf16.gmra.mrb[0].mxu0 %v920
        %v1094 = vpop.f32.mrb[0].mxu0
        %v1095 = vadd.f32 0.0, %v1094
        %v1096 = vpop.f32.mrb[0].mxu0
        %v1097 = vpop.f32.mrb[0].mxu0
        %v1098 = vadd.f32 0.0, %v1097
        %v1099 = vpop.f32.mrb[0].mxu0
        %1100 = vmatprep.mubr.bf16.mxu0 0
        %1101 = vmatmul.mubr.bf16.gmra.mrb[0].mxu0 %v923
        %v1102 = vpop.f32.mrb[0].mxu0
        %v1103 = vadd.f32 0.0, %v1102
        %v1104 = vpop.f32.mrb[0].mxu0
        %v1105 = vpop.f32.mrb[0].mxu0
        %v1106 = vadd.f32 0.0, %v1105
        %v1107 = vpop.f32.mrb[0].mxu0
        %1108 = vmatprep.mubr.bf16.mxu0 0
        %1109 = vmatmul.mubr.bf16.gmra.mrb[0].mxu0 %v926
        %v1110 = vpop.f32.mrb[0].mxu0
        %v1111 = vadd.f32 0.0, %v1110
        %v1112 = vpop.f32.mrb[0].mxu0
        %v1113 = vpop.f32.mrb[0].mxu0
        %v1114 = vadd.f32 0.0, %v1113
        %v1115 = vpop.f32.mrb[0].mxu0
        %1116 = vmatprep.mubr.bf16.mxu0 0
        %1117 = vmatmul.mubr.bf16.gmra.mrb[0].mxu0 %v929
        %v1118 = vpop.f32.mrb[0].mxu0
        %v1119 = vadd.f32 0.0, %v1118
        %v1120 = vpop.f32.mrb[0].mxu0
        %v1121 = vpop.f32.mrb[0].mxu0
        %v1122 = vadd.f32 0.0, %v1121
        %v1123 = vpop.f32.mrb[0].mxu0
        %1124 = vmatprep.mubr.bf16.mxu0 0
        %1125 = vmatmul.mubr.bf16.gmra.mrb[0].mxu0 %v932
        %v1126 = vpop.f32.mrb[0].mxu0
        %v1127 = vadd.f32 0.0, %v1126
        %v1128 = vpop.f32.mrb[0].mxu0
        %v1129 = vpop.f32.mrb[0].mxu0
        %v1130 = vadd.f32 0.0, %v1129
        %v1131 = vpop.f32.mrb[0].mxu0
        %1132 = vmatprep.mubr.bf16.mxu0 0
        %1133 = vmatmul.mubr.bf16.gmra.mrb[0].mxu0 %v935
        %v1134 = vpop.f32.mrb[0].mxu0
        %v1135 = vadd.f32 0.0, %v1134
        %v1136 = vpop.f32.mrb[0].mxu0
        %v1137 = vpop.f32.mrb[0].mxu0
        %v1138 = vadd.f32 0.0, %v1137
        %v1139 = vpop.f32.mrb[0].mxu0
        %1140 = vmatprep.mubr.bf16.mxu0 0
        %1141 = vmatmul.mubr.bf16.gmra.mrb[0].mxu0 %v938
        %v1142 = vpop.f32.mrb[0].mxu0
        %v1143 = vadd.f32 0.0, %v1142
        %v1144 = vpop.f32.mrb[0].mxu0
        %v1145 = vpop.f32.mrb[0].mxu0
        %v1146 = vadd.f32 0.0, %v1145
        %v1147 = vpop.f32.mrb[0].mxu0
        %1148 = vmatprep.mubr.bf16.mxu0 0
        %1149 = vmatmul.mubr.bf16.gmra.mrb[0].mxu0 %v941
        %v1150 = vpop.f32.mrb[0].mxu0
        %v1151 = vadd.f32 0.0, %v1150
        %v1152 = vpop.f32.mrb[0].mxu0
        %v1153 = vpop.f32.mrb[0].mxu0
        %v1154 = vadd.f32 0.0, %v1153
        %v1155 = vpop.f32.mrb[0].mxu0
        %1156 = vmatprep.mubr.bf16.mxu0 0
        %1157 = vmatmul.mubr.bf16.gmra.mrb[0].mxu0 %v944
        %v1158 = vpop.f32.mrb[0].mxu0
        %v1159 = vadd.f32 0.0, %v1158
        %v1160 = vpop.f32.mrb[0].mxu0
        %v1161 = vpop.f32.mrb[0].mxu0
        %v1162 = vadd.f32 0.0, %v1161
        %v1163 = vpop.f32.mrb[0].mxu0
        %1164 = vmatprep.mubr.bf16.mxu0 0
        %1165 = vmatmul.mubr.bf16.gmra.mrb[0].mxu0 %v947
        %v1166 = vpop.f32.mrb[0].mxu0
        %v1167 = vadd.f32 0.0, %v1166
        %v1168 = vpop.f32.mrb[0].mxu0
        %v1169 = vpop.f32.mrb[0].mxu0
        %v1170 = vadd.f32 0.0, %v1169
        %v1171 = vpop.f32.mrb[0].mxu0
        %1172 = vmatprep.mubr.bf16.mxu0 0
        %1173 = vmatmul.mubr.bf16.gmra.mrb[0].mxu0 %v950
        %v1174 = vpop.f32.mrb[0].mxu0
        %v1175 = vadd.f32 0.0, %v1174
        %v1176 = vpop.f32.mrb[0].mxu0
        %v1177 = vpop.f32.mrb[0].mxu0
        %v1178 = vadd.f32 0.0, %v1177
        %v1179 = vpop.f32.mrb[0].mxu0
        %1180 = vdwg.mxu0
        %v1181 = vadd.f32 %v991, %v1055
        %v1182 = vadd.f32 %v994, %v1058
        %v1183 = vadd.f32 %v999, %v1063
        %v1184 = vadd.f32 %v1002, %v1066
        %v1185 = vadd.f32 %v1007, %v1071
        %v1186 = vadd.f32 %v1010, %v1074
        %v1187 = vadd.f32 %v1015, %v1079
        %v1188 = vadd.f32 %v1018, %v1082
        %v1189 = vadd.f32 %v1023, %v1087
        %v1190 = vadd.f32 %v1026, %v1090
        %v1191 = vadd.f32 %v1031, %v1095
        %v1192 = vadd.f32 %v1034, %v1098
        %v1193 = vadd.f32 %v1039, %v1103
        %v1194 = vadd.f32 %v1042, %v1106
        %v1195 = vadd.f32 %v1047, %v1111
        %v1196 = vadd.f32 %v1050, %v1114
        %v1197 = vadd.f32 %v1181, %v1119
        %v1198 = vadd.f32 %v1182, %v1122
        %v1199 = vadd.f32 %v1183, %v1127
        %v1200 = vadd.f32 %v1184, %v1130
        %v1201 = vadd.f32 %v1185, %v1135
        %v1202 = vadd.f32 %v1186, %v1138
        %v1203 = vadd.f32 %v1187, %v1143
        %v1204 = vadd.f32 %v1188, %v1146
        %v1205 = vadd.f32 %v1189, %v1151
        %v1206 = vadd.f32 %v1190, %v1154
        %v1207 = vadd.f32 %v1191, %v1159
        %v1208 = vadd.f32 %v1192, %v1162
        %v1209 = vadd.f32 %v1193, %v1167
        %v1210 = vadd.f32 %v1194, %v1170
        %v1211 = vadd.f32 %v1195, %v1175
        %v1212 = vadd.f32 %v1196, %v1178
        %v1213 = vpack.c.bf16 %v455, %v454
        %v1214 = vpack.c.bf16 %v457, %v456
        %v1215 = vpack.c.bf16 %v459, %v458
        %v1216 = vpack.c.bf16 %v461, %v460
        %v1217 = vpack.c.bf16 %v463, %v462
        %v1218 = vpack.c.bf16 %v465, %v464
        %v1219 = vpack.c.bf16 %v467, %v466
        %v1220 = vpack.c.bf16 %v469, %v468
        %v1221 = vld [vmem:[%s3] sm:$0x7]
        %v1222 = vld [vmem:[%s4] sm:$0x1]
        %v1224 = vlaneseq
        %v1225 = vshrl.u32 %v1224, 7
        %v1226 = vsub.s32 0, %v1225
        %v1227 = vrot.slane %v1222, %v1226
        %vm1229 = vcmask 39936
        %v1231 = vsel %vm1229, %v1213, 0
        %v1234 = vsel %vm1229, %v1214, 0
        %v1237 = vsel %vm1229, %v1215, 0
        %v1240 = vsel %vm1229, %v1216, 0
        %v1243 = vsel %vm1229, %v1217, 0
        %v1246 = vsel %vm1229, %v1218, 0
        %v1249 = vsel %vm1229, %v1219, 0
        %v1252 = vsel %vm1229, %v1220, 0
        %vm1254 = vcmask 1041408
        %vm1255 = vcmask 1042432
        %v1256 = vsel %vm1254, 4294967295, 65535
        %v1257 = vsel %vm1255, %v1256, 0
        %v1259 = vand.u32 %v1221, %v1257
        %1261 = vmatprep.subr.bf16.mxu0 0
        %1262 = vmatpush1.bf16.msra.mxu0 %v1259
        %1263 = vmatprep.subr.bf16.mxu0 0
        %1264 = vmatpush1.bf16.msra.mxu0 0
        %1265 = vmatprep.subr.bf16.mxu0 0
        %1266 = vmatpush1.bf16.msra.mxu0 0
        %1267 = vmatprep.subr.bf16.mxu0 0
        %1268 = vmatpush1.bf16.msra.mxu0 0
        %1269 = vmatprep.subr.bf16.mxu0 0
        %1270 = vmatpush1.bf16.msra.mxu0 0
        %1271 = vmatprep.subr.bf16.mxu0 0
        %1272 = vmatpush1.bf16.msra.mxu0 0
        %1273 = vmatprep.subr.bf16.mxu0 0
        %1274 = vmatpush1.bf16.msra.mxu0 0
        %1275 = vmatprep.subr.bf16.mxu0 0
        %1276 = vmatpush1.bf16.msra.mxu0 0
        %1277 = vmatprep.subr.bf16.mxu0 0
        %1278 = vmatpush1.bf16.msra.mxu0 0
        %1279 = vmatprep.subr.bf16.mxu0 0
        %1280 = vmatpush1.bf16.msra.mxu0 0
        %1281 = vmatprep.subr.bf16.mxu0 0
        %1282 = vmatpush1.bf16.msra.mxu0 0
        %1283 = vmatprep.subr.bf16.mxu0 0
        %1284 = vmatpush1.bf16.msra.mxu0 0
        %1285 = vmatprep.subr.bf16.mxu0 0
        %1286 = vmatpush1.bf16.msra.mxu0 0
        %1287 = vmatprep.subr.bf16.mxu0 0
        %1288 = vmatpush1.bf16.msra.mxu0 0
        %1289 = vmatprep.subr.bf16.mxu0 0
        %1290 = vmatpush1.bf16.msra.mxu0 0
        %1291 = vmatprep.subr.bf16.mxu0 0
        %1292 = vmatpush1.bf16.msra.mxu0 0
        %1293 = vmatprep.mubr.bf16.mxu0 0
        %1294 = vmatmul.mubr.bf16.gmra.mrb[0].mxu0 %v1231
        %v1295 = vpop.f32.mrb[0].mxu0
        %v1296 = vadd.f32 %v1227, %v1295
        %v1297 = vpop.f32.mrb[0].mxu0
        %v1298 = vpop.f32.mrb[0].mxu0
        %v1299 = vadd.f32 %v1227, %v1298
        %v1300 = vpop.f32.mrb[0].mxu0
        %1301 = vmatprep.mubr.bf16.mxu0 0
        %1302 = vmatmul.mubr.bf16.gmra.mrb[0].mxu0 %v1234
        %v1303 = vpop.f32.mrb[0].mxu0
        %v1304 = vadd.f32 %v1227, %v1303
        %v1305 = vpop.f32.mrb[0].mxu0
        %v1306 = vpop.f32.mrb[0].mxu0
        %v1307 = vadd.f32 %v1227, %v1306
        %v1308 = vpop.f32.mrb[0].mxu0
        %1309 = vmatprep.mubr.bf16.mxu0 0
        %1310 = vmatmul.mubr.bf16.gmra.mrb[0].mxu0 %v1237
        %v1311 = vpop.f32.mrb[0].mxu0
        %v1312 = vadd.f32 %v1227, %v1311
        %v1313 = vpop.f32.mrb[0].mxu0
        %v1314 = vpop.f32.mrb[0].mxu0
        %v1315 = vadd.f32 %v1227, %v1314
        %v1316 = vpop.f32.mrb[0].mxu0
        %1317 = vmatprep.mubr.bf16.mxu0 0
        %1318 = vmatmul.mubr.bf16.gmra.mrb[0].mxu0 %v1240
        %v1319 = vpop.f32.mrb[0].mxu0
        %v1320 = vadd.f32 %v1227, %v1319
        %v1321 = vpop.f32.mrb[0].mxu0
        %v1322 = vpop.f32.mrb[0].mxu0
        %v1323 = vadd.f32 %v1227, %v1322
        %v1324 = vpop.f32.mrb[0].mxu0
        %1325 = vmatprep.mubr.bf16.mxu0 0
        %1326 = vmatmul.mubr.bf16.gmra.mrb[0].mxu0 %v1243
        %v1327 = vpop.f32.mrb[0].mxu0
        %v1328 = vadd.f32 %v1227, %v1327
        %v1329 = vpop.f32.mrb[0].mxu0
        %v1330 = vpop.f32.mrb[0].mxu0
        %v1331 = vadd.f32 %v1227, %v1330
        %v1332 = vpop.f32.mrb[0].mxu0
        %1333 = vmatprep.mubr.bf16.mxu0 0
        %1334 = vmatmul.mubr.bf16.gmra.mrb[0].mxu0 %v1246
        %v1335 = vpop.f32.mrb[0].mxu0
        %v1336 = vadd.f32 %v1227, %v1335
        %v1337 = vpop.f32.mrb[0].mxu0
        %v1338 = vpop.f32.mrb[0].mxu0
        %v1339 = vadd.f32 %v1227, %v1338
        %v1340 = vpop.f32.mrb[0].mxu0
        %1341 = vmatprep.mubr.bf16.mxu0 0
        %1342 = vmatmul.mubr.bf16.gmra.mrb[0].mxu0 %v1249
        %v1343 = vpop.f32.mrb[0].mxu0
        %v1344 = vadd.f32 %v1227, %v1343
        %v1345 = vpop.f32.mrb[0].mxu0
        %v1346 = vpop.f32.mrb[0].mxu0
        %v1347 = vadd.f32 %v1227, %v1346
        %v1348 = vpop.f32.mrb[0].mxu0
        %1349 = vmatprep.mubr.bf16.mxu0 0
        %1350 = vmatmul.mubr.bf16.gmra.mrb[0].mxu0 %v1252
        %v1351 = vpop.f32.mrb[0].mxu0
        %v1352 = vadd.f32 %v1227, %v1351
        %v1353 = vpop.f32.mrb[0].mxu0
        %v1354 = vpop.f32.mrb[0].mxu0
        %v1355 = vadd.f32 %v1227, %v1354
        %v1356 = vpop.f32.mrb[0].mxu0
        %1357 = vdwg.mxu0
        %v1358 = vmul.f32 %v991, %v991
        %v1359 = vmul.f32 %v994, %v994
        %v1360 = vmul.f32 %v999, %v999
        %v1361 = vmul.f32 %v1002, %v1002
        %v1362 = vmul.f32 %v1007, %v1007
        %v1363 = vmul.f32 %v1010, %v1010
        %v1364 = vmul.f32 %v1015, %v1015
        %v1365 = vmul.f32 %v1018, %v1018
        %v1366 = vmul.f32 %v1023, %v1023
        %v1367 = vmul.f32 %v1026, %v1026
        %v1368 = vmul.f32 %v1031, %v1031
        %v1369 = vmul.f32 %v1034, %v1034
        %v1370 = vmul.f32 %v1039, %v1039
        %v1371 = vmul.f32 %v1042, %v1042
        %v1372 = vmul.f32 %v1047, %v1047
        %v1373 = vmul.f32 %v1050, %v1050
        %v1374 = vmul.f32 %v1055, %v1055
        %v1375 = vmul.f32 %v1058, %v1058
        %v1376 = vmul.f32 %v1063, %v1063
        %v1377 = vmul.f32 %v1066, %v1066
        %v1378 = vmul.f32 %v1071, %v1071
        %v1379 = vmul.f32 %v1074, %v1074
        %v1380 = vmul.f32 %v1079, %v1079
        %v1381 = vmul.f32 %v1082, %v1082
        %v1382 = vmul.f32 %v1087, %v1087
        %v1383 = vmul.f32 %v1090, %v1090
        %v1384 = vmul.f32 %v1095, %v1095
        %v1385 = vmul.f32 %v1098, %v1098
        %v1386 = vmul.f32 %v1103, %v1103
        %v1387 = vmul.f32 %v1106, %v1106
        %v1388 = vmul.f32 %v1111, %v1111
        %v1389 = vmul.f32 %v1114, %v1114
        %v1390 = vadd.f32 %v1358, %v1374
        %v1391 = vadd.f32 %v1359, %v1375
        %v1392 = vadd.f32 %v1360, %v1376
        %v1393 = vadd.f32 %v1361, %v1377
        %v1394 = vadd.f32 %v1362, %v1378
        %v1395 = vadd.f32 %v1363, %v1379
        %v1396 = vadd.f32 %v1364, %v1380
        %v1397 = vadd.f32 %v1365, %v1381
        %v1398 = vadd.f32 %v1366, %v1382
        %v1399 = vadd.f32 %v1367, %v1383
        %v1400 = vadd.f32 %v1368, %v1384
        %v1401 = vadd.f32 %v1369, %v1385
        %v1402 = vadd.f32 %v1370, %v1386
        %v1403 = vadd.f32 %v1371, %v1387
        %v1404 = vadd.f32 %v1372, %v1388
        %v1405 = vadd.f32 %v1373, %v1389
        %v1406 = vmul.f32 %v1119, %v1119
        %v1407 = vmul.f32 %v1122, %v1122
        %v1408 = vmul.f32 %v1127, %v1127
        %v1409 = vmul.f32 %v1130, %v1130
        %v1410 = vmul.f32 %v1135, %v1135
        %v1411 = vmul.f32 %v1138, %v1138
        %v1412 = vmul.f32 %v1143, %v1143
        %v1413 = vmul.f32 %v1146, %v1146
        %v1414 = vmul.f32 %v1151, %v1151
        %v1415 = vmul.f32 %v1154, %v1154
        %v1416 = vmul.f32 %v1159, %v1159
        %v1417 = vmul.f32 %v1162, %v1162
        %v1418 = vmul.f32 %v1167, %v1167
        %v1419 = vmul.f32 %v1170, %v1170
        %v1420 = vmul.f32 %v1175, %v1175
        %v1421 = vmul.f32 %v1178, %v1178
        %v1422 = vadd.f32 %v1390, %v1406
        %v1423 = vadd.f32 %v1391, %v1407
        %v1424 = vadd.f32 %v1392, %v1408
        %v1425 = vadd.f32 %v1393, %v1409
        %v1426 = vadd.f32 %v1394, %v1410
        %v1427 = vadd.f32 %v1395, %v1411
        %v1428 = vadd.f32 %v1396, %v1412
        %v1429 = vadd.f32 %v1397, %v1413
        %v1430 = vadd.f32 %v1398, %v1414
        %v1431 = vadd.f32 %v1399, %v1415
        %v1432 = vadd.f32 %v1400, %v1416
        %v1433 = vadd.f32 %v1401, %v1417
        %v1434 = vadd.f32 %v1402, %v1418
        %v1435 = vadd.f32 %v1403, %v1419
        %v1436 = vadd.f32 %v1404, %v1420
        %v1437 = vadd.f32 %v1405, %v1421
        %v1438 = vadd.f32 %v1197, %v1296
        %v1439 = vadd.f32 %v1198, %v1299
        %v1440 = vadd.f32 %v1199, %v1304
        %v1441 = vadd.f32 %v1200, %v1307
        %v1442 = vadd.f32 %v1201, %v1312
        %v1443 = vadd.f32 %v1202, %v1315
        %v1444 = vadd.f32 %v1203, %v1320
        %v1445 = vadd.f32 %v1204, %v1323
        %v1446 = vadd.f32 %v1205, %v1328
        %v1447 = vadd.f32 %v1206, %v1331
        %v1448 = vadd.f32 %v1207, %v1336
        %v1449 = vadd.f32 %v1208, %v1339
        %v1450 = vadd.f32 %v1209, %v1344
        %v1451 = vadd.f32 %v1210, %v1347
        %v1452 = vadd.f32 %v1211, %v1352
        %v1453 = vadd.f32 %v1212, %v1355
        %v1454 = vmul.f32 %v1296, %v1296
        %v1455 = vmul.f32 %v1299, %v1299
        %v1456 = vmul.f32 %v1304, %v1304
        %v1457 = vmul.f32 %v1307, %v1307
        %v1458 = vmul.f32 %v1312, %v1312
        %v1459 = vmul.f32 %v1315, %v1315
        %v1460 = vmul.f32 %v1320, %v1320
        %v1461 = vmul.f32 %v1323, %v1323
        %v1462 = vmul.f32 %v1328, %v1328
        %v1463 = vmul.f32 %v1331, %v1331
        %v1464 = vmul.f32 %v1336, %v1336
        %v1465 = vmul.f32 %v1339, %v1339
        %v1466 = vmul.f32 %v1344, %v1344
        %v1467 = vmul.f32 %v1347, %v1347
        %v1468 = vmul.f32 %v1352, %v1352
        %v1469 = vmul.f32 %v1355, %v1355
        %v1470 = vadd.f32 %v1422, %v1454
        %v1471 = vadd.f32 %v1423, %v1455
        %v1472 = vadd.f32 %v1424, %v1456
        %v1473 = vadd.f32 %v1425, %v1457
        %v1474 = vadd.f32 %v1426, %v1458
        %v1475 = vadd.f32 %v1427, %v1459
        %v1476 = vadd.f32 %v1428, %v1460
        %v1477 = vadd.f32 %v1429, %v1461
        %v1478 = vadd.f32 %v1430, %v1462
        %v1479 = vadd.f32 %v1431, %v1463
        %v1480 = vadd.f32 %v1432, %v1464
        %v1481 = vadd.f32 %v1433, %v1465
        %v1482 = vadd.f32 %v1434, %v1466
        %v1483 = vadd.f32 %v1435, %v1467
        %v1484 = vadd.f32 %v1436, %v1468
        %v1485 = vadd.f32 %v1437, %v1469
        %1502 = vrot.lane.b32.xlu0 %v1296, 120
        %v1503 = vpop.permute.xlu0 %1502
        %1504 = vrot.lane.b32.xlu0 %v1299, 120
        %v1505 = vpop.permute.xlu0 %1504
        %1506 = vrot.lane.b32.xlu0 %v1304, 120
        %v1507 = vpop.permute.xlu0 %1506
        %1508 = vrot.lane.b32.xlu0 %v1307, 120
        %v1509 = vpop.permute.xlu0 %1508
        %1510 = vrot.lane.b32.xlu0 %v1312, 120
        %v1511 = vpop.permute.xlu0 %1510
        %1512 = vrot.lane.b32.xlu0 %v1315, 120
        %v1513 = vpop.permute.xlu0 %1512
        %1514 = vrot.lane.b32.xlu0 %v1320, 120
        %v1515 = vpop.permute.xlu0 %1514
        %1516 = vrot.lane.b32.xlu0 %v1323, 120
        %v1517 = vpop.permute.xlu0 %1516
        %1518 = vrot.lane.b32.xlu0 %v1328, 120
        %v1519 = vpop.permute.xlu0 %1518
        %1520 = vrot.lane.b32.xlu0 %v1331, 120
        %v1521 = vpop.permute.xlu0 %1520
        %1522 = vrot.lane.b32.xlu0 %v1336, 120
        %v1523 = vpop.permute.xlu0 %1522
        %1524 = vrot.lane.b32.xlu0 %v1339, 120
        %v1525 = vpop.permute.xlu0 %1524
        %1526 = vrot.lane.b32.xlu0 %v1344, 120
        %v1527 = vpop.permute.xlu0 %1526
        %1528 = vrot.lane.b32.xlu0 %v1347, 120
        %v1529 = vpop.permute.xlu0 %1528
        %1530 = vrot.lane.b32.xlu0 %v1352, 120
        %v1531 = vpop.permute.xlu0 %1530
        %1532 = vrot.lane.b32.xlu0 %v1355, 120
        %v1533 = vpop.permute.xlu0 %1532
        %v1550 = vadd.f32 %v1438, %v1503
        %v1551 = vadd.f32 %v1439, %v1505
        %v1552 = vadd.f32 %v1440, %v1507
        %v1553 = vadd.f32 %v1441, %v1509
        %v1554 = vadd.f32 %v1442, %v1511
        %v1555 = vadd.f32 %v1443, %v1513
        %v1556 = vadd.f32 %v1444, %v1515
        %v1557 = vadd.f32 %v1445, %v1517
        %v1558 = vadd.f32 %v1446, %v1519
        %v1559 = vadd.f32 %v1447, %v1521
        %v1560 = vadd.f32 %v1448, %v1523
        %v1561 = vadd.f32 %v1449, %v1525
        %v1562 = vadd.f32 %v1450, %v1527
        %v1563 = vadd.f32 %v1451, %v1529
        %v1564 = vadd.f32 %v1452, %v1531
        %v1565 = vadd.f32 %v1453, %v1533
        %1582 = vrot.lane.b32.xlu0 %v1454, 120
        %v1583 = vpop.permute.xlu0 %1582
        %1584 = vrot.lane.b32.xlu0 %v1455, 120
        %v1585 = vpop.permute.xlu0 %1584
        %1586 = vrot.lane.b32.xlu0 %v1456, 120
        %v1587 = vpop.permute.xlu0 %1586
        %1588 = vrot.lane.b32.xlu0 %v1457, 120
        %v1589 = vpop.permute.xlu0 %1588
        %1590 = vrot.lane.b32.xlu0 %v1458, 120
        %v1591 = vpop.permute.xlu0 %1590
        %1592 = vrot.lane.b32.xlu0 %v1459, 120
        %v1593 = vpop.permute.xlu0 %1592
        %1594 = vrot.lane.b32.xlu0 %v1460, 120
        %v1595 = vpop.permute.xlu0 %1594
        %1596 = vrot.lane.b32.xlu0 %v1461, 120
        %v1597 = vpop.permute.xlu0 %1596
        %1598 = vrot.lane.b32.xlu0 %v1462, 120
        %v1599 = vpop.permute.xlu0 %1598
        %1600 = vrot.lane.b32.xlu0 %v1463, 120
        %v1601 = vpop.permute.xlu0 %1600
        %1602 = vrot.lane.b32.xlu0 %v1464, 120
        %v1603 = vpop.permute.xlu0 %1602
        %1604 = vrot.lane.b32.xlu0 %v1465, 120
        %v1605 = vpop.permute.xlu0 %1604
        %1606 = vrot.lane.b32.xlu0 %v1466, 120
        %v1607 = vpop.permute.xlu0 %1606
        %1608 = vrot.lane.b32.xlu0 %v1467, 120
        %v1609 = vpop.permute.xlu0 %1608
        %1610 = vrot.lane.b32.xlu0 %v1468, 120
        %v1611 = vpop.permute.xlu0 %1610
        %1612 = vrot.lane.b32.xlu0 %v1469, 120
        %v1613 = vpop.permute.xlu0 %1612
        %v1630 = vadd.f32 %v1470, %v1583
        %v1631 = vadd.f32 %v1471, %v1585
        %v1632 = vadd.f32 %v1472, %v1587
        %v1633 = vadd.f32 %v1473, %v1589
        %v1634 = vadd.f32 %v1474, %v1591
        %v1635 = vadd.f32 %v1475, %v1593
        %v1636 = vadd.f32 %v1476, %v1595
        %v1637 = vadd.f32 %v1477, %v1597
        %v1638 = vadd.f32 %v1478, %v1599
        %v1639 = vadd.f32 %v1479, %v1601
        %v1640 = vadd.f32 %v1480, %v1603
        %v1641 = vadd.f32 %v1481, %v1605
        %v1642 = vadd.f32 %v1482, %v1607
        %v1643 = vadd.f32 %v1483, %v1609
        %v1644 = vadd.f32 %v1484, %v1611
        %v1645 = vadd.f32 %v1485, %v1613
        %1646 = vrot.lane.b32.xlu0 %v1296, 112
        %v1647 = vpop.permute.xlu0 %1646
        %1648 = vrot.lane.b32.xlu0 %v1299, 112
        %v1649 = vpop.permute.xlu0 %1648
        %1650 = vrot.lane.b32.xlu0 %v1304, 112
        %v1651 = vpop.permute.xlu0 %1650
        %1652 = vrot.lane.b32.xlu0 %v1307, 112
        %v1653 = vpop.permute.xlu0 %1652
        %1654 = vrot.lane.b32.xlu0 %v1312, 112
        %v1655 = vpop.permute.xlu0 %1654
        %1656 = vrot.lane.b32.xlu0 %v1315, 112
        %v1657 = vpop.permute.xlu0 %1656
        %1658 = vrot.lane.b32.xlu0 %v1320, 112
        %v1659 = vpop.permute.xlu0 %1658
        %1660 = vrot.lane.b32.xlu0 %v1323, 112
        %v1661 = vpop.permute.xlu0 %1660
        %1662 = vrot.lane.b32.xlu0 %v1328, 112
        %v1663 = vpop.permute.xlu0 %1662
        %1664 = vrot.lane.b32.xlu0 %v1331, 112
        %v1665 = vpop.permute.xlu0 %1664
        %1666 = vrot.lane.b32.xlu0 %v1336, 112
        %v1667 = vpop.permute.xlu0 %1666
        %1668 = vrot.lane.b32.xlu0 %v1339, 112
        %v1669 = vpop.permute.xlu0 %1668
        %1670 = vrot.lane.b32.xlu0 %v1344, 112
        %v1671 = vpop.permute.xlu0 %1670
        %1672 = vrot.lane.b32.xlu0 %v1347, 112
        %v1673 = vpop.permute.xlu0 %1672
        %1674 = vrot.lane.b32.xlu0 %v1352, 112
        %v1675 = vpop.permute.xlu0 %1674
        %1676 = vrot.lane.b32.xlu0 %v1355, 112
        %v1677 = vpop.permute.xlu0 %1676
        %v1694 = vadd.f32 %v1550, %v1647
        %v1695 = vadd.f32 %v1551, %v1649
        %v1696 = vadd.f32 %v1552, %v1651
        %v1697 = vadd.f32 %v1553, %v1653
        %v1698 = vadd.f32 %v1554, %v1655
        %v1699 = vadd.f32 %v1555, %v1657
        %v1700 = vadd.f32 %v1556, %v1659
        %v1701 = vadd.f32 %v1557, %v1661
        %v1702 = vadd.f32 %v1558, %v1663
        %v1703 = vadd.f32 %v1559, %v1665
        %v1704 = vadd.f32 %v1560, %v1667
        %v1705 = vadd.f32 %v1561, %v1669
        %v1706 = vadd.f32 %v1562, %v1671
        %v1707 = vadd.f32 %v1563, %v1673
        %v1708 = vadd.f32 %v1564, %v1675
        %v1709 = vadd.f32 %v1565, %v1677
        %1710 = vrot.lane.b32.xlu0 %v1454, 112
        %v1711 = vpop.permute.xlu0 %1710
        %1712 = vrot.lane.b32.xlu0 %v1455, 112
        %v1713 = vpop.permute.xlu0 %1712
        %1714 = vrot.lane.b32.xlu0 %v1456, 112
        %v1715 = vpop.permute.xlu0 %1714
        %1716 = vrot.lane.b32.xlu0 %v1457, 112
        %v1717 = vpop.permute.xlu0 %1716
        %1718 = vrot.lane.b32.xlu0 %v1458, 112
        %v1719 = vpop.permute.xlu0 %1718
        %1720 = vrot.lane.b32.xlu0 %v1459, 112
        %v1721 = vpop.permute.xlu0 %1720
        %1722 = vrot.lane.b32.xlu0 %v1460, 112
        %v1723 = vpop.permute.xlu0 %1722
        %1724 = vrot.lane.b32.xlu0 %v1461, 112
        %v1725 = vpop.permute.xlu0 %1724
        %1726 = vrot.lane.b32.xlu0 %v1462, 112
        %v1727 = vpop.permute.xlu0 %1726
        %1728 = vrot.lane.b32.xlu0 %v1463, 112
        %v1729 = vpop.permute.xlu0 %1728
        %1730 = vrot.lane.b32.xlu0 %v1464, 112
        %v1731 = vpop.permute.xlu0 %1730
        %1732 = vrot.lane.b32.xlu0 %v1465, 112
        %v1733 = vpop.permute.xlu0 %1732
        %1734 = vrot.lane.b32.xlu0 %v1466, 112
        %v1735 = vpop.permute.xlu0 %1734
        %1736 = vrot.lane.b32.xlu0 %v1467, 112
        %v1737 = vpop.permute.xlu0 %1736
        %1738 = vrot.lane.b32.xlu0 %v1468, 112
        %v1739 = vpop.permute.xlu0 %1738
        %1740 = vrot.lane.b32.xlu0 %v1469, 112
        %v1741 = vpop.permute.xlu0 %1740
        %v1758 = vadd.f32 %v1630, %v1711
        %v1759 = vadd.f32 %v1631, %v1713
        %v1760 = vadd.f32 %v1632, %v1715
        %v1761 = vadd.f32 %v1633, %v1717
        %v1762 = vadd.f32 %v1634, %v1719
        %v1763 = vadd.f32 %v1635, %v1721
        %v1764 = vadd.f32 %v1636, %v1723
        %v1765 = vadd.f32 %v1637, %v1725
        %v1766 = vadd.f32 %v1638, %v1727
        %v1767 = vadd.f32 %v1639, %v1729
        %v1768 = vadd.f32 %v1640, %v1731
        %v1769 = vadd.f32 %v1641, %v1733
        %v1770 = vadd.f32 %v1642, %v1735
        %v1771 = vadd.f32 %v1643, %v1737
        %v1772 = vadd.f32 %v1644, %v1739
        %v1773 = vadd.f32 %v1645, %v1741
        %1774 = vrot.lane.b32.xlu0 %v1296, 104
        %v1775 = vpop.permute.xlu0 %1774
        %1776 = vrot.lane.b32.xlu0 %v1299, 104
        %v1777 = vpop.permute.xlu0 %1776
        %1778 = vrot.lane.b32.xlu0 %v1304, 104
        %v1779 = vpop.permute.xlu0 %1778
        %1780 = vrot.lane.b32.xlu0 %v1307, 104
        %v1781 = vpop.permute.xlu0 %1780
        %1782 = vrot.lane.b32.xlu0 %v1312, 104
        %v1783 = vpop.permute.xlu0 %1782
        %1784 = vrot.lane.b32.xlu0 %v1315, 104
        %v1785 = vpop.permute.xlu0 %1784
        %1786 = vrot.lane.b32.xlu0 %v1320, 104
        %v1787 = vpop.permute.xlu0 %1786
        %1788 = vrot.lane.b32.xlu0 %v1323, 104
        %v1789 = vpop.permute.xlu0 %1788
        %1790 = vrot.lane.b32.xlu0 %v1328, 104
        %v1791 = vpop.permute.xlu0 %1790
        %1792 = vrot.lane.b32.xlu0 %v1331, 104
        %v1793 = vpop.permute.xlu0 %1792
        %1794 = vrot.lane.b32.xlu0 %v1336, 104
        %v1795 = vpop.permute.xlu0 %1794
        %1796 = vrot.lane.b32.xlu0 %v1339, 104
        %v1797 = vpop.permute.xlu0 %1796
        %1798 = vrot.lane.b32.xlu0 %v1344, 104
        %v1799 = vpop.permute.xlu0 %1798
        %1800 = vrot.lane.b32.xlu0 %v1347, 104
        %v1801 = vpop.permute.xlu0 %1800
        %1802 = vrot.lane.b32.xlu0 %v1352, 104
        %v1803 = vpop.permute.xlu0 %1802
        %1804 = vrot.lane.b32.xlu0 %v1355, 104
        %v1805 = vpop.permute.xlu0 %1804
        %v1822 = vadd.f32 %v1694, %v1775
        %v1823 = vadd.f32 %v1695, %v1777
        %v1824 = vadd.f32 %v1696, %v1779
        %v1825 = vadd.f32 %v1697, %v1781
        %v1826 = vadd.f32 %v1698, %v1783
        %v1827 = vadd.f32 %v1699, %v1785
        %v1828 = vadd.f32 %v1700, %v1787
        %v1829 = vadd.f32 %v1701, %v1789
        %v1830 = vadd.f32 %v1702, %v1791
        %v1831 = vadd.f32 %v1703, %v1793
        %v1832 = vadd.f32 %v1704, %v1795
        %v1833 = vadd.f32 %v1705, %v1797
        %v1834 = vadd.f32 %v1706, %v1799
        %v1835 = vadd.f32 %v1707, %v1801
        %v1836 = vadd.f32 %v1708, %v1803
        %v1837 = vadd.f32 %v1709, %v1805
        %1838 = vrot.lane.b32.xlu0 %v1454, 104
        %v1839 = vpop.permute.xlu0 %1838
        %1840 = vrot.lane.b32.xlu0 %v1455, 104
        %v1841 = vpop.permute.xlu0 %1840
        %1842 = vrot.lane.b32.xlu0 %v1456, 104
        %v1843 = vpop.permute.xlu0 %1842
        %1844 = vrot.lane.b32.xlu0 %v1457, 104
        %v1845 = vpop.permute.xlu0 %1844
        %1846 = vrot.lane.b32.xlu0 %v1458, 104
        %v1847 = vpop.permute.xlu0 %1846
        %1848 = vrot.lane.b32.xlu0 %v1459, 104
        %v1849 = vpop.permute.xlu0 %1848
        %1850 = vrot.lane.b32.xlu0 %v1460, 104
        %v1851 = vpop.permute.xlu0 %1850
        %1852 = vrot.lane.b32.xlu0 %v1461, 104
        %v1853 = vpop.permute.xlu0 %1852
        %1854 = vrot.lane.b32.xlu0 %v1462, 104
        %v1855 = vpop.permute.xlu0 %1854
        %1856 = vrot.lane.b32.xlu0 %v1463, 104
        %v1857 = vpop.permute.xlu0 %1856
        %1858 = vrot.lane.b32.xlu0 %v1464, 104
        %v1859 = vpop.permute.xlu0 %1858
        %1860 = vrot.lane.b32.xlu0 %v1465, 104
        %v1861 = vpop.permute.xlu0 %1860
        %1862 = vrot.lane.b32.xlu0 %v1466, 104
        %v1863 = vpop.permute.xlu0 %1862
        %1864 = vrot.lane.b32.xlu0 %v1467, 104
        %v1865 = vpop.permute.xlu0 %1864
        %1866 = vrot.lane.b32.xlu0 %v1468, 104
        %v1867 = vpop.permute.xlu0 %1866
        %1868 = vrot.lane.b32.xlu0 %v1469, 104
        %v1869 = vpop.permute.xlu0 %1868
        %v1886 = vadd.f32 %v1758, %v1839
        %v1887 = vadd.f32 %v1759, %v1841
        %v1888 = vadd.f32 %v1760, %v1843
        %v1889 = vadd.f32 %v1761, %v1845
        %v1890 = vadd.f32 %v1762, %v1847
        %v1891 = vadd.f32 %v1763, %v1849
        %v1892 = vadd.f32 %v1764, %v1851
        %v1893 = vadd.f32 %v1765, %v1853
        %v1894 = vadd.f32 %v1766, %v1855
        %v1895 = vadd.f32 %v1767, %v1857
        %v1896 = vadd.f32 %v1768, %v1859
        %v1897 = vadd.f32 %v1769, %v1861
        %v1898 = vadd.f32 %v1770, %v1863
        %v1899 = vadd.f32 %v1771, %v1865
        %v1900 = vadd.f32 %v1772, %v1867
        %v1901 = vadd.f32 %v1773, %v1869
        %1902 = vrot.lane.b32.xlu0 %v1296, 96
        %v1903 = vpop.permute.xlu0 %1902
        %1904 = vrot.lane.b32.xlu0 %v1299, 96
        %v1905 = vpop.permute.xlu0 %1904
        %1906 = vrot.lane.b32.xlu0 %v1304, 96
        %v1907 = vpop.permute.xlu0 %1906
        %1908 = vrot.lane.b32.xlu0 %v1307, 96
        %v1909 = vpop.permute.xlu0 %1908
        %1910 = vrot.lane.b32.xlu0 %v1312, 96
        %v1911 = vpop.permute.xlu0 %1910
        %1912 = vrot.lane.b32.xlu0 %v1315, 96
        %v1913 = vpop.permute.xlu0 %1912
        %1914 = vrot.lane.b32.xlu0 %v1320, 96
        %v1915 = vpop.permute.xlu0 %1914
        %1916 = vrot.lane.b32.xlu0 %v1323, 96
        %v1917 = vpop.permute.xlu0 %1916
        %1918 = vrot.lane.b32.xlu0 %v1328, 96
        %v1919 = vpop.permute.xlu0 %1918
        %1920 = vrot.lane.b32.xlu0 %v1331, 96
        %v1921 = vpop.permute.xlu0 %1920
        %1922 = vrot.lane.b32.xlu0 %v1336, 96
        %v1923 = vpop.permute.xlu0 %1922
        %1924 = vrot.lane.b32.xlu0 %v1339, 96
        %v1925 = vpop.permute.xlu0 %1924
        %1926 = vrot.lane.b32.xlu0 %v1344, 96
        %v1927 = vpop.permute.xlu0 %1926
        %1928 = vrot.lane.b32.xlu0 %v1347, 96
        %v1929 = vpop.permute.xlu0 %1928
        %1930 = vrot.lane.b32.xlu0 %v1352, 96
        %v1931 = vpop.permute.xlu0 %1930
        %1932 = vrot.lane.b32.xlu0 %v1355, 96
        %v1933 = vpop.permute.xlu0 %1932
        %v1950 = vadd.f32 %v1822, %v1903
        %v1951 = vadd.f32 %v1823, %v1905
        %v1952 = vadd.f32 %v1824, %v1907
        %v1953 = vadd.f32 %v1825, %v1909
        %v1954 = vadd.f32 %v1826, %v1911
        %v1955 = vadd.f32 %v1827, %v1913
        %v1956 = vadd.f32 %v1828, %v1915
        %v1957 = vadd.f32 %v1829, %v1917
        %v1958 = vadd.f32 %v1830, %v1919
        %v1959 = vadd.f32 %v1831, %v1921
        %v1960 = vadd.f32 %v1832, %v1923
        %v1961 = vadd.f32 %v1833, %v1925
        %v1962 = vadd.f32 %v1834, %v1927
        %v1963 = vadd.f32 %v1835, %v1929
        %v1964 = vadd.f32 %v1836, %v1931
        %v1965 = vadd.f32 %v1837, %v1933
        %1966 = vrot.lane.b32.xlu0 %v1454, 96
        %v1967 = vpop.permute.xlu0 %1966
        %1968 = vrot.lane.b32.xlu0 %v1455, 96
        %v1969 = vpop.permute.xlu0 %1968
        %1970 = vrot.lane.b32.xlu0 %v1456, 96
        %v1971 = vpop.permute.xlu0 %1970
        %1972 = vrot.lane.b32.xlu0 %v1457, 96
        %v1973 = vpop.permute.xlu0 %1972
        %1974 = vrot.lane.b32.xlu0 %v1458, 96
        %v1975 = vpop.permute.xlu0 %1974
        %1976 = vrot.lane.b32.xlu0 %v1459, 96
        %v1977 = vpop.permute.xlu0 %1976
        %1978 = vrot.lane.b32.xlu0 %v1460, 96
        %v1979 = vpop.permute.xlu0 %1978
        %1980 = vrot.lane.b32.xlu0 %v1461, 96
        %v1981 = vpop.permute.xlu0 %1980
        %1982 = vrot.lane.b32.xlu0 %v1462, 96
        %v1983 = vpop.permute.xlu0 %1982
        %1984 = vrot.lane.b32.xlu0 %v1463, 96
        %v1985 = vpop.permute.xlu0 %1984
        %1986 = vrot.lane.b32.xlu0 %v1464, 96
        %v1987 = vpop.permute.xlu0 %1986
        %1988 = vrot.lane.b32.xlu0 %v1465, 96
        %v1989 = vpop.permute.xlu0 %1988
        %1990 = vrot.lane.b32.xlu0 %v1466, 96
        %v1991 = vpop.permute.xlu0 %1990
        %1992 = vrot.lane.b32.xlu0 %v1467, 96
        %v1993 = vpop.permute.xlu0 %1992
        %1994 = vrot.lane.b32.xlu0 %v1468, 96
        %v1995 = vpop.permute.xlu0 %1994
        %1996 = vrot.lane.b32.xlu0 %v1469, 96
        %v1997 = vpop.permute.xlu0 %1996
        %v2014 = vadd.f32 %v1886, %v1967
        %v2015 = vadd.f32 %v1887, %v1969
        %v2016 = vadd.f32 %v1888, %v1971
        %v2017 = vadd.f32 %v1889, %v1973
        %v2018 = vadd.f32 %v1890, %v1975
        %v2019 = vadd.f32 %v1891, %v1977
        %v2020 = vadd.f32 %v1892, %v1979
        %v2021 = vadd.f32 %v1893, %v1981
        %v2022 = vadd.f32 %v1894, %v1983
        %v2023 = vadd.f32 %v1895, %v1985
        %v2024 = vadd.f32 %v1896, %v1987
        %v2025 = vadd.f32 %v1897, %v1989
        %v2026 = vadd.f32 %v1898, %v1991
        %v2027 = vadd.f32 %v1899, %v1993
        %v2028 = vadd.f32 %v1900, %v1995
        %v2029 = vadd.f32 %v1901, %v1997
        %v2030 = vmul.f32 %v1950, %v1950
        %v2031 = vmul.f32 %v1951, %v1951
        %v2032 = vmul.f32 %v1952, %v1952
        %v2033 = vmul.f32 %v1953, %v1953
        %v2034 = vmul.f32 %v1954, %v1954
        %v2035 = vmul.f32 %v1955, %v1955
        %v2036 = vmul.f32 %v1956, %v1956
        %v2037 = vmul.f32 %v1957, %v1957
        %v2038 = vmul.f32 %v1958, %v1958
        %v2039 = vmul.f32 %v1959, %v1959
        %v2040 = vmul.f32 %v1960, %v1960
        %v2041 = vmul.f32 %v1961, %v1961
        %v2042 = vmul.f32 %v1962, %v1962
        %v2043 = vmul.f32 %v1963, %v1963
        %v2044 = vmul.f32 %v1964, %v1964
        %v2045 = vmul.f32 %v1965, %v1965
        %v2046 = vsub.f32 %v2030, %v2014
        %v2047 = vsub.f32 %v2031, %v2015
        %v2048 = vsub.f32 %v2032, %v2016
        %v2049 = vsub.f32 %v2033, %v2017
        %v2050 = vsub.f32 %v2034, %v2018
        %v2051 = vsub.f32 %v2035, %v2019
        %v2052 = vsub.f32 %v2036, %v2020
        %v2053 = vsub.f32 %v2037, %v2021
        %v2054 = vsub.f32 %v2038, %v2022
        %v2055 = vsub.f32 %v2039, %v2023
        %v2056 = vsub.f32 %v2040, %v2024
        %v2057 = vsub.f32 %v2041, %v2025
        %v2058 = vsub.f32 %v2042, %v2026
        %v2059 = vsub.f32 %v2043, %v2027
        %v2060 = vsub.f32 %v2044, %v2028
        %v2061 = vsub.f32 %v2045, %v2029
        %vm2062 = vcmask 64512
        %v2063 = vsel %vm2062, %v2046, 0.0
        %2064 = vadd.xlane.f32.xlu0 %v2063
        %v2065 = vpop.xlane.xlu0 %2064
        %v2066 = vsel %vm2062, %v2047, 0.0
        %2067 = vadd.xlane.f32.xlu0 %v2066
        %v2068 = vpop.xlane.xlu0 %2067
        %v2069 = vsel %vm2062, %v2048, 0.0
        %2070 = vadd.xlane.f32.xlu0 %v2069
        %v2071 = vpop.xlane.xlu0 %2070
        %v2072 = vsel %vm2062, %v2049, 0.0
        %2073 = vadd.xlane.f32.xlu0 %v2072
        %v2074 = vpop.xlane.xlu0 %2073
        %v2075 = vsel %vm2062, %v2050, 0.0
        %2076 = vadd.xlane.f32.xlu0 %v2075
        %v2077 = vpop.xlane.xlu0 %2076
        %v2078 = vsel %vm2062, %v2051, 0.0
        %2079 = vadd.xlane.f32.xlu0 %v2078
        %v2080 = vpop.xlane.xlu0 %2079
        %v2081 = vsel %vm2062, %v2052, 0.0
        %2082 = vadd.xlane.f32.xlu0 %v2081
        %v2083 = vpop.xlane.xlu0 %2082
        %v2084 = vsel %vm2062, %v2053, 0.0
        %2085 = vadd.xlane.f32.xlu0 %v2084
        %v2086 = vpop.xlane.xlu0 %2085
        %v2087 = vsel %vm2062, %v2054, 0.0
        %2088 = vadd.xlane.f32.xlu0 %v2087
        %v2089 = vpop.xlane.xlu0 %2088
        %v2090 = vsel %vm2062, %v2055, 0.0
        %2091 = vadd.xlane.f32.xlu0 %v2090
        %v2092 = vpop.xlane.xlu0 %2091
        %v2093 = vsel %vm2062, %v2056, 0.0
        %2094 = vadd.xlane.f32.xlu0 %v2093
        %v2095 = vpop.xlane.xlu0 %2094
        %v2096 = vsel %vm2062, %v2057, 0.0
        %2097 = vadd.xlane.f32.xlu0 %v2096
        %v2098 = vpop.xlane.xlu0 %2097
        %v2099 = vsel %vm2062, %v2058, 0.0
        %2100 = vadd.xlane.f32.xlu0 %v2099
        %v2101 = vpop.xlane.xlu0 %2100
        %v2102 = vsel %vm2062, %v2059, 0.0
        %2103 = vadd.xlane.f32.xlu0 %v2102
        %v2104 = vpop.xlane.xlu0 %2103
        %v2105 = vsel %vm2062, %v2060, 0.0
        %2106 = vadd.xlane.f32.xlu0 %v2105
        %v2107 = vpop.xlane.xlu0 %2106
        %v2108 = vsel %vm2062, %v2061, 0.0
        %2109 = vadd.xlane.f32.xlu0 %v2108
        %v2110 = vpop.xlane.xlu0 %2109
        %v2111 = vmul.f32 %v2065, 0.5
        %v2112 = vmul.f32 %v2068, 0.5
        %v2113 = vmul.f32 %v2071, 0.5
        %v2114 = vmul.f32 %v2074, 0.5
        %v2115 = vmul.f32 %v2077, 0.5
        %v2116 = vmul.f32 %v2080, 0.5
        %v2117 = vmul.f32 %v2083, 0.5
        %v2118 = vmul.f32 %v2086, 0.5
        %v2119 = vmul.f32 %v2089, 0.5
        %v2120 = vmul.f32 %v2092, 0.5
        %v2121 = vmul.f32 %v2095, 0.5
        %v2122 = vmul.f32 %v2098, 0.5
        %v2123 = vmul.f32 %v2101, 0.5
        %v2124 = vmul.f32 %v2104, 0.5
        %v2125 = vmul.f32 %v2107, 0.5
        %v2126 = vmul.f32 %v2110, 0.5
        %v2127 = vsel %vm1229, %v454, 0.0
        %2128 = vadd.xlane.f32.xlu0 %v2127
        %v2129 = vpop.xlane.xlu0 %2128
        %v2130 = vsel %vm1229, %v455, 0.0
        %2131 = vadd.xlane.f32.xlu0 %v2130
        %v2132 = vpop.xlane.xlu0 %2131
        %v2133 = vsel %vm1229, %v456, 0.0
        %2134 = vadd.xlane.f32.xlu0 %v2133
        %v2135 = vpop.xlane.xlu0 %2134
        %v2136 = vsel %vm1229, %v457, 0.0
        %2137 = vadd.xlane.f32.xlu0 %v2136
        %v2138 = vpop.xlane.xlu0 %2137
        %v2139 = vsel %vm1229, %v458, 0.0
        %2140 = vadd.xlane.f32.xlu0 %v2139
        %v2141 = vpop.xlane.xlu0 %2140
        %v2142 = vsel %vm1229, %v459, 0.0
        %2143 = vadd.xlane.f32.xlu0 %v2142
        %v2144 = vpop.xlane.xlu0 %2143
        %v2145 = vsel %vm1229, %v460, 0.0
        %2146 = vadd.xlane.f32.xlu0 %v2145
        %v2147 = vpop.xlane.xlu0 %2146
        %v2148 = vsel %vm1229, %v461, 0.0
        %2149 = vadd.xlane.f32.xlu0 %v2148
        %v2150 = vpop.xlane.xlu0 %2149
        %v2151 = vsel %vm1229, %v462, 0.0
        %2152 = vadd.xlane.f32.xlu0 %v2151
        %v2153 = vpop.xlane.xlu0 %2152
        %v2154 = vsel %vm1229, %v463, 0.0
        %2155 = vadd.xlane.f32.xlu0 %v2154
        %v2156 = vpop.xlane.xlu0 %2155
        %v2157 = vsel %vm1229, %v464, 0.0
        %2158 = vadd.xlane.f32.xlu0 %v2157
        %v2159 = vpop.xlane.xlu0 %2158
        %v2160 = vsel %vm1229, %v465, 0.0
        %2161 = vadd.xlane.f32.xlu0 %v2160
        %v2162 = vpop.xlane.xlu0 %2161
        %v2163 = vsel %vm1229, %v466, 0.0
        %2164 = vadd.xlane.f32.xlu0 %v2163
        %v2165 = vpop.xlane.xlu0 %2164
        %v2166 = vsel %vm1229, %v467, 0.0
        %2167 = vadd.xlane.f32.xlu0 %v2166
        %v2168 = vpop.xlane.xlu0 %2167
        %v2169 = vsel %vm1229, %v468, 0.0
        %2170 = vadd.xlane.f32.xlu0 %v2169
        %v2171 = vpop.xlane.xlu0 %2170
        %v2172 = vsel %vm1229, %v469, 0.0
        %2173 = vadd.xlane.f32.xlu0 %v2172
        %v2174 = vpop.xlane.xlu0 %2173
        %v2175 = vadd.f32 %v1197, %v2129
        %v2176 = vadd.f32 %v1198, %v2132
        %v2177 = vadd.f32 %v1199, %v2135
        %v2178 = vadd.f32 %v1200, %v2138
        %v2179 = vadd.f32 %v1201, %v2141
        %v2180 = vadd.f32 %v1202, %v2144
        %v2181 = vadd.f32 %v1203, %v2147
        %v2182 = vadd.f32 %v1204, %v2150
        %v2183 = vadd.f32 %v1205, %v2153
        %v2184 = vadd.f32 %v1206, %v2156
        %v2185 = vadd.f32 %v1207, %v2159
        %v2186 = vadd.f32 %v1208, %v2162
        %v2187 = vadd.f32 %v1209, %v2165
        %v2188 = vadd.f32 %v1210, %v2168
        %v2189 = vadd.f32 %v1211, %v2171
        %v2190 = vadd.f32 %v1212, %v2174
        %s2191 = sld [smem:[#allocation2]]
        %v2192 = vstv %s2191
        %v2193 = vadd.f32 %v2175, %v2192
        %v2194 = vadd.f32 %v2176, %v2192
        %v2195 = vadd.f32 %v2177, %v2192
        %v2196 = vadd.f32 %v2178, %v2192
        %v2197 = vadd.f32 %v2179, %v2192
        %v2198 = vadd.f32 %v2180, %v2192
        %v2199 = vadd.f32 %v2181, %v2192
        %v2200 = vadd.f32 %v2182, %v2192
        %v2201 = vadd.f32 %v2183, %v2192
        %v2202 = vadd.f32 %v2184, %v2192
        %v2203 = vadd.f32 %v2185, %v2192
        %v2204 = vadd.f32 %v2186, %v2192
        %v2205 = vadd.f32 %v2187, %v2192
        %v2206 = vadd.f32 %v2188, %v2192
        %v2207 = vadd.f32 %v2189, %v2192
        %v2208 = vadd.f32 %v2190, %v2192
        %2225 = vrot.lane.b32.xlu0 %v1055, 8
        %v2226 = vpop.permute.xlu0 %2225
        %2227 = vrot.lane.b32.xlu0 %v1058, 8
        %v2228 = vpop.permute.xlu0 %2227
        %2229 = vrot.lane.b32.xlu0 %v1063, 8
        %v2230 = vpop.permute.xlu0 %2229
        %2231 = vrot.lane.b32.xlu0 %v1066, 8
        %v2232 = vpop.permute.xlu0 %2231
        %2233 = vrot.lane.b32.xlu0 %v1071, 8
        %v2234 = vpop.permute.xlu0 %2233
        %2235 = vrot.lane.b32.xlu0 %v1074, 8
        %v2236 = vpop.permute.xlu0 %2235
        %2237 = vrot.lane.b32.xlu0 %v1079, 8
        %v2238 = vpop.permute.xlu0 %2237
        %2239 = vrot.lane.b32.xlu0 %v1082, 8
        %v2240 = vpop.permute.xlu0 %2239
        %2241 = vrot.lane.b32.xlu0 %v1087, 8
        %v2242 = vpop.permute.xlu0 %2241
        %2243 = vrot.lane.b32.xlu0 %v1090, 8
        %v2244 = vpop.permute.xlu0 %2243
        %2245 = vrot.lane.b32.xlu0 %v1095, 8
        %v2246 = vpop.permute.xlu0 %2245
        %2247 = vrot.lane.b32.xlu0 %v1098, 8
        %v2248 = vpop.permute.xlu0 %2247
        %2249 = vrot.lane.b32.xlu0 %v1103, 8
        %v2250 = vpop.permute.xlu0 %2249
        %2251 = vrot.lane.b32.xlu0 %v1106, 8
        %v2252 = vpop.permute.xlu0 %2251
        %2253 = vrot.lane.b32.xlu0 %v1111, 8
        %v2254 = vpop.permute.xlu0 %2253
        %2255 = vrot.lane.b32.xlu0 %v1114, 8
        %v2256 = vpop.permute.xlu0 %2255
        %2289 = vrot.lane.b32.xlu0 %v1119, 16
        %v2290 = vpop.permute.xlu0 %2289
        %2291 = vrot.lane.b32.xlu0 %v1122, 16
        %v2292 = vpop.permute.xlu0 %2291
        %2293 = vrot.lane.b32.xlu0 %v1127, 16
        %v2294 = vpop.permute.xlu0 %2293
        %2295 = vrot.lane.b32.xlu0 %v1130, 16
        %v2296 = vpop.permute.xlu0 %2295
        %2297 = vrot.lane.b32.xlu0 %v1135, 16
        %v2298 = vpop.permute.xlu0 %2297
        %2299 = vrot.lane.b32.xlu0 %v1138, 16
        %v2300 = vpop.permute.xlu0 %2299
        %2301 = vrot.lane.b32.xlu0 %v1143, 16
        %v2302 = vpop.permute.xlu0 %2301
        %2303 = vrot.lane.b32.xlu0 %v1146, 16
        %v2304 = vpop.permute.xlu0 %2303
        %2305 = vrot.lane.b32.xlu0 %v1151, 16
        %v2306 = vpop.permute.xlu0 %2305
        %2307 = vrot.lane.b32.xlu0 %v1154, 16
        %v2308 = vpop.permute.xlu0 %2307
        %2309 = vrot.lane.b32.xlu0 %v1159, 16
        %v2310 = vpop.permute.xlu0 %2309
        %2311 = vrot.lane.b32.xlu0 %v1162, 16
        %v2312 = vpop.permute.xlu0 %2311
        %2313 = vrot.lane.b32.xlu0 %v1167, 16
        %v2314 = vpop.permute.xlu0 %2313
        %2315 = vrot.lane.b32.xlu0 %v1170, 16
        %v2316 = vpop.permute.xlu0 %2315
        %2317 = vrot.lane.b32.xlu0 %v1175, 16
        %v2318 = vpop.permute.xlu0 %2317
        %2319 = vrot.lane.b32.xlu0 %v1178, 16
        %v2320 = vpop.permute.xlu0 %2319
        %2337 = vrot.lane.b32.xlu0 %v1296, 24
        %v2338 = vpop.permute.xlu0 %2337
        %2339 = vrot.lane.b32.xlu0 %v1299, 24
        %v2340 = vpop.permute.xlu0 %2339
        %2341 = vrot.lane.b32.xlu0 %v1304, 24
        %v2342 = vpop.permute.xlu0 %2341
        %2343 = vrot.lane.b32.xlu0 %v1307, 24
        %v2344 = vpop.permute.xlu0 %2343
        %2345 = vrot.lane.b32.xlu0 %v1312, 24
        %v2346 = vpop.permute.xlu0 %2345
        %2347 = vrot.lane.b32.xlu0 %v1315, 24
        %v2348 = vpop.permute.xlu0 %2347
        %2349 = vrot.lane.b32.xlu0 %v1320, 24
        %v2350 = vpop.permute.xlu0 %2349
        %2351 = vrot.lane.b32.xlu0 %v1323, 24
        %v2352 = vpop.permute.xlu0 %2351
        %2353 = vrot.lane.b32.xlu0 %v1328, 24
        %v2354 = vpop.permute.xlu0 %2353
        %2355 = vrot.lane.b32.xlu0 %v1331, 24
        %v2356 = vpop.permute.xlu0 %2355
        %2357 = vrot.lane.b32.xlu0 %v1336, 24
        %v2358 = vpop.permute.xlu0 %2357
        %2359 = vrot.lane.b32.xlu0 %v1339, 24
        %v2360 = vpop.permute.xlu0 %2359
        %2361 = vrot.lane.b32.xlu0 %v1344, 24
        %v2362 = vpop.permute.xlu0 %2361
        %2363 = vrot.lane.b32.xlu0 %v1347, 24
        %v2364 = vpop.permute.xlu0 %2363
        %2365 = vrot.lane.b32.xlu0 %v1352, 24
        %v2366 = vpop.permute.xlu0 %2365
        %2367 = vrot.lane.b32.xlu0 %v1355, 24
        %v2368 = vpop.permute.xlu0 %2367
        %v2385 = vsel %vm2062, %v991, %v2226
        %v2386 = vsel %vm2062, %v994, %v2228
        %v2387 = vsel %vm2062, %v999, %v2230
        %v2388 = vsel %vm2062, %v1002, %v2232
        %v2389 = vsel %vm2062, %v1007, %v2234
        %v2390 = vsel %vm2062, %v1010, %v2236
        %v2391 = vsel %vm2062, %v1015, %v2238
        %v2392 = vsel %vm2062, %v1018, %v2240
        %v2393 = vsel %vm2062, %v1023, %v2242
        %v2394 = vsel %vm2062, %v1026, %v2244
        %v2395 = vsel %vm2062, %v1031, %v2246
        %v2396 = vsel %vm2062, %v1034, %v2248
        %v2397 = vsel %vm2062, %v1039, %v2250
        %v2398 = vsel %vm2062, %v1042, %v2252
        %v2399 = vsel %vm2062, %v1047, %v2254
        %v2400 = vsel %vm2062, %v1050, %v2256
        %vm2401 = vcmask 130048
        %v2402 = vsel %vm2401, %v2385, %v2290
        %v2403 = vsel %vm2401, %v2386, %v2292
        %v2404 = vsel %vm2401, %v2387, %v2294
        %v2405 = vsel %vm2401, %v2388, %v2296
        %v2406 = vsel %vm2401, %v2389, %v2298
        %v2407 = vsel %vm2401, %v2390, %v2300
        %v2408 = vsel %vm2401, %v2391, %v2302
        %v2409 = vsel %vm2401, %v2392, %v2304
        %v2410 = vsel %vm2401, %v2393, %v2306
        %v2411 = vsel %vm2401, %v2394, %v2308
        %v2412 = vsel %vm2401, %v2395, %v2310
        %v2413 = vsel %vm2401, %v2396, %v2312
        %v2414 = vsel %vm2401, %v2397, %v2314
        %v2415 = vsel %vm2401, %v2398, %v2316
        %v2416 = vsel %vm2401, %v2399, %v2318
        %v2417 = vsel %vm2401, %v2400, %v2320
        %vm2418 = vcmask 195584
        %v2419 = vsel %vm2418, %v2402, %v2338
        %v2420 = vsel %vm2418, %v2403, %v2340
        %v2421 = vsel %vm2418, %v2404, %v2342
        %v2422 = vsel %vm2418, %v2405, %v2344
        %v2423 = vsel %vm2418, %v2406, %v2346
        %v2424 = vsel %vm2418, %v2407, %v2348
        %v2425 = vsel %vm2418, %v2408, %v2350
        %v2426 = vsel %vm2418, %v2409, %v2352
        %v2427 = vsel %vm2418, %v2410, %v2354
        %v2428 = vsel %vm2418, %v2411, %v2356
        %v2429 = vsel %vm2418, %v2412, %v2358
        %v2430 = vsel %vm2418, %v2413, %v2360
        %v2431 = vsel %vm2418, %v2414, %v2362
        %v2432 = vsel %vm2418, %v2415, %v2364
        %v2433 = vsel %vm2418, %v2416, %v2366
        %v2434 = vsel %vm2418, %v2417, %v2368
        %v2435 = vpack.c.bf16 %v2420, %v2419
        %v2436 = vpack.c.bf16 %v2422, %v2421
        %v2437 = vpack.c.bf16 %v2424, %v2423
        %v2438 = vpack.c.bf16 %v2426, %v2425
        %v2439 = vpack.c.bf16 %v2428, %v2427
        %v2440 = vpack.c.bf16 %v2430, %v2429
        %v2441 = vpack.c.bf16 %v2432, %v2431
        %v2442 = vpack.c.bf16 %v2434, %v2433
        %v2443 = vld [vmem:[%s5] sm:$0xf]
        %v2444 = vld [vmem:[%s5 + $0x4] sm:$0xf]
        %v2445 = vld [vmem:[%s5 + $0x8] sm:$0xf]
        %v2446 = vld [vmem:[%s5 + $0xc] sm:$0xf]
        %v2447 = vld [vmem:[%s5 + $0x10] sm:$0xf]
        %v2448 = vld [vmem:[%s5 + $0x14] sm:$0xf]
        %v2449 = vld [vmem:[%s5 + $0x18] sm:$0xf]
        %v2450 = vld [vmem:[%s5 + $0x1c] sm:$0xf]
        %v2451 = vld [vmem:[%s6] sm:$0x1]
        %v2453 = vlaneseq
        %v2454 = vshrl.u32 %v2453, 7
        %v2455 = vsub.s32 0, %v2454
        %v2456 = vrot.slane %v2451, %v2455
        %v2466 = vunpack.c.l.b16 %v2443
        %v2467 = vunpack.c.l.b16 %v2444
        %v2468 = vunpack.c.l.b16 %v2445
        %v2469 = vunpack.c.l.b16 %v2446
        %v2470 = vunpack.c.l.b16 %v2447
        %v2471 = vunpack.c.l.b16 %v2448
        %v2472 = vunpack.c.l.b16 %v2449
        %v2473 = vunpack.c.l.b16 %v2450
        %v2474 = vpack.c.b16 %v2467, %v2466
        %v2475 = vpack.c.b16 %v2469, %v2468
        %v2476 = vpack.c.b16 %v2471, %v2470
        %v2477 = vpack.c.b16 %v2473, %v2472
        %vm2482 = vcmask 523264
        %v2484 = vsel %vm2482, %v2435, 0
        %v2487 = vsel %vm2482, %v2436, 0
        %v2490 = vsel %vm2482, %v2437, 0
        %v2493 = vsel %vm2482, %v2438, 0
        %v2496 = vsel %vm2482, %v2439, 0
        %v2499 = vsel %vm2482, %v2440, 0
        %v2502 = vsel %vm2482, %v2441, 0
        %v2505 = vsel %vm2482, %v2442, 0
        %2507 = vmatprep.subr.bf16.mxu0 0
        %2508 = vmatpush1.bf16.msra.mxu0 %v2474
        %2509 = vmatprep.subr.bf16.mxu0 0
        %2510 = vmatpush1.bf16.msra.mxu0 %v2475
        %2511 = vmatprep.subr.bf16.mxu0 0
        %2512 = vmatpush1.bf16.msra.mxu0 %v2476
        %2513 = vmatprep.subr.bf16.mxu0 0
        %2514 = vmatpush1.bf16.msra.mxu0 %v2477
        %2515 = vmatprep.subr.bf16.mxu0 0
        %2516 = vmatpush1.bf16.msra.mxu0 0
        %2517 = vmatprep.subr.bf16.mxu0 0
        %2518 = vmatpush1.bf16.msra.mxu0 0
        %2519 = vmatprep.subr.bf16.mxu0 0
        %2520 = vmatpush1.bf16.msra.mxu0 0
        %2521 = vmatprep.subr.bf16.mxu0 0
        %2522 = vmatpush1.bf16.msra.mxu0 0
        %2523 = vmatprep.subr.bf16.mxu0 0
        %2524 = vmatpush1.bf16.msra.mxu0 0
        %2525 = vmatprep.subr.bf16.mxu0 0
        %2526 = vmatpush1.bf16.msra.mxu0 0
        %2527 = vmatprep.subr.bf16.mxu0 0
        %2528 = vmatpush1.bf16.msra.mxu0 0
        %2529 = vmatprep.subr.bf16.mxu0 0
        %2530 = vmatpush1.bf16.msra.mxu0 0
        %2531 = vmatprep.subr.bf16.mxu0 0
        %2532 = vmatpush1.bf16.msra.mxu0 0
        %2533 = vmatprep.subr.bf16.mxu0 0
        %2534 = vmatpush1.bf16.msra.mxu0 0
        %2535 = vmatprep.subr.bf16.mxu0 0
        %2536 = vmatpush1.bf16.msra.mxu0 0
        %2537 = vmatprep.subr.bf16.mxu0 0
        %2538 = vmatpush1.bf16.msra.mxu0 0
        %2539 = vmatprep.mubr.bf16.mxu0 0
        %2540 = vmatmul.mubr.bf16.gmra.mrb[0].mxu0 %v2484
        %v2541 = vpop.f32.mrb[0].mxu0
        %v2542 = vadd.f32 %v2456, %v2541
        %v2543 = vpop.f32.mrb[0].mxu0
        %v2544 = vpop.f32.mrb[0].mxu0
        %v2545 = vadd.f32 %v2456, %v2544
        %v2546 = vpop.f32.mrb[0].mxu0
        %2547 = vmatprep.mubr.bf16.mxu0 0
        %2548 = vmatmul.mubr.bf16.gmra.mrb[0].mxu0 %v2487
        %v2549 = vpop.f32.mrb[0].mxu0
        %v2550 = vadd.f32 %v2456, %v2549
        %v2551 = vpop.f32.mrb[0].mxu0
        %v2552 = vpop.f32.mrb[0].mxu0
        %v2553 = vadd.f32 %v2456, %v2552
        %v2554 = vpop.f32.mrb[0].mxu0
        %2555 = vmatprep.mubr.bf16.mxu0 0
        %2556 = vmatmul.mubr.bf16.gmra.mrb[0].mxu0 %v2490
        %v2557 = vpop.f32.mrb[0].mxu0
        %v2558 = vadd.f32 %v2456, %v2557
        %v2559 = vpop.f32.mrb[0].mxu0
        %v2560 = vpop.f32.mrb[0].mxu0
        %v2561 = vadd.f32 %v2456, %v2560
        %v2562 = vpop.f32.mrb[0].mxu0
        %2563 = vmatprep.mubr.bf16.mxu0 0
        %2564 = vmatmul.mubr.bf16.gmra.mrb[0].mxu0 %v2493
        %v2565 = vpop.f32.mrb[0].mxu0
        %v2566 = vadd.f32 %v2456, %v2565
        %v2567 = vpop.f32.mrb[0].mxu0
        %v2568 = vpop.f32.mrb[0].mxu0
        %v2569 = vadd.f32 %v2456, %v2568
        %v2570 = vpop.f32.mrb[0].mxu0
        %2571 = vmatprep.mubr.bf16.mxu0 0
        %2572 = vmatmul.mubr.bf16.gmra.mrb[0].mxu0 %v2496
        %v2573 = vpop.f32.mrb[0].mxu0
        %v2574 = vadd.f32 %v2456, %v2573
        %v2575 = vpop.f32.mrb[0].mxu0
        %v2576 = vpop.f32.mrb[0].mxu0
        %v2577 = vadd.f32 %v2456, %v2576
        %v2578 = vpop.f32.mrb[0].mxu0
        %2579 = vmatprep.mubr.bf16.mxu0 0
        %2580 = vmatmul.mubr.bf16.gmra.mrb[0].mxu0 %v2499
        %v2581 = vpop.f32.mrb[0].mxu0
        %v2582 = vadd.f32 %v2456, %v2581
        %v2583 = vpop.f32.mrb[0].mxu0
        %v2584 = vpop.f32.mrb[0].mxu0
        %v2585 = vadd.f32 %v2456, %v2584
        %v2586 = vpop.f32.mrb[0].mxu0
        %2587 = vmatprep.mubr.bf16.mxu0 0
        %2588 = vmatmul.mubr.bf16.gmra.mrb[0].mxu0 %v2502
        %v2589 = vpop.f32.mrb[0].mxu0
        %v2590 = vadd.f32 %v2456, %v2589
        %v2591 = vpop.f32.mrb[0].mxu0
        %v2592 = vpop.f32.mrb[0].mxu0
        %v2593 = vadd.f32 %v2456, %v2592
        %v2594 = vpop.f32.mrb[0].mxu0
        %2595 = vmatprep.mubr.bf16.mxu0 0
        %2596 = vmatmul.mubr.bf16.gmra.mrb[0].mxu0 %v2505
        %v2597 = vpop.f32.mrb[0].mxu0
        %v2598 = vadd.f32 %v2456, %v2597
        %v2599 = vpop.f32.mrb[0].mxu0
        %v2600 = vpop.f32.mrb[0].mxu0
        %v2601 = vadd.f32 %v2456, %v2600
        %v2602 = vpop.f32.mrb[0].mxu0
        %2603 = vdwg.mxu0
        %v2604 = vmax.f32 %v2542, 0.0
        %v2605 = vmax.f32 %v2545, 0.0
        %v2606 = vmax.f32 %v2550, 0.0
        %v2607 = vmax.f32 %v2553, 0.0
        %v2608 = vmax.f32 %v2558, 0.0
        %v2609 = vmax.f32 %v2561, 0.0
        %v2610 = vmax.f32 %v2566, 0.0
        %v2611 = vmax.f32 %v2569, 0.0
        %v2612 = vmax.f32 %v2574, 0.0
        %v2613 = vmax.f32 %v2577, 0.0
        %v2614 = vmax.f32 %v2582, 0.0
        %v2615 = vmax.f32 %v2585, 0.0
        %v2616 = vmax.f32 %v2590, 0.0
        %v2617 = vmax.f32 %v2593, 0.0
        %v2618 = vmax.f32 %v2598, 0.0
        %v2619 = vmax.f32 %v2601, 0.0
        %v2620 = vpack.c.bf16 %v2605, %v2604
        %v2621 = vpack.c.bf16 %v2607, %v2606
        %v2622 = vpack.c.bf16 %v2609, %v2608
        %v2623 = vpack.c.bf16 %v2611, %v2610
        %v2624 = vpack.c.bf16 %v2613, %v2612
        %v2625 = vpack.c.bf16 %v2615, %v2614
        %v2626 = vpack.c.bf16 %v2617, %v2616
        %v2627 = vpack.c.bf16 %v2619, %v2618
        %v2628 = vld [vmem:[%s7] sm:$0xf]
        %v2629 = vld [vmem:[%s7 + $0x4] sm:$0xf]
        %v2630 = vld [vmem:[%s7 + $0x8] sm:$0xf]
        %v2631 = vld [vmem:[%s7 + $0xc] sm:$0xf]
        %v2632 = vld [vmem:[%s8] sm:$0x1]
        %v2634 = vlaneseq
        %v2635 = vshrl.u32 %v2634, 7
        %v2636 = vsub.s32 0, %v2635
        %v2637 = vrot.slane %v2632, %v2636
        %v2643 = vunpack.c.l.b16 %v2628
        %v2644 = vunpack.c.l.b16 %v2629
        %v2645 = vunpack.c.l.b16 %v2630
        %v2646 = vunpack.c.l.b16 %v2631
        %v2647 = vpack.c.b16 %v2644, %v2643
        %v2648 = vpack.c.b16 %v2646, %v2645
        %vm2651 = vcmask 261120
        %v2653 = vsel %vm2651, %v2620, 0
        %v2656 = vsel %vm2651, %v2621, 0
        %v2659 = vsel %vm2651, %v2622, 0
        %v2662 = vsel %vm2651, %v2623, 0
        %v2665 = vsel %vm2651, %v2624, 0
        %v2668 = vsel %vm2651, %v2625, 0
        %v2671 = vsel %vm2651, %v2626, 0
        %v2674 = vsel %vm2651, %v2627, 0
        %2676 = vmatprep.subr.bf16.mxu0 0
        %2677 = vmatpush1.bf16.msra.mxu0 %v2647
        %2678 = vmatprep.subr.bf16.mxu0 0
        %2679 = vmatpush1.bf16.msra.mxu0 %v2648
        %2680 = vmatprep.subr.bf16.mxu0 0
        %2681 = vmatpush1.bf16.msra.mxu0 0
        %2682 = vmatprep.subr.bf16.mxu0 0
        %2683 = vmatpush1.bf16.msra.mxu0 0
        %2684 = vmatprep.subr.bf16.mxu0 0
        %2685 = vmatpush1.bf16.msra.mxu0 0
        %2686 = vmatprep.subr.bf16.mxu0 0
        %2687 = vmatpush1.bf16.msra.mxu0 0
        %2688 = vmatprep.subr.bf16.mxu0 0
        %2689 = vmatpush1.bf16.msra.mxu0 0
        %2690 = vmatprep.subr.bf16.mxu0 0
        %2691 = vmatpush1.bf16.msra.mxu0 0
        %2692 = vmatprep.subr.bf16.mxu0 0
        %2693 = vmatpush1.bf16.msra.mxu0 0
        %2694 = vmatprep.subr.bf16.mxu0 0
        %2695 = vmatpush1.bf16.msra.mxu0 0
        %2696 = vmatprep.subr.bf16.mxu0 0
        %2697 = vmatpush1.bf16.msra.mxu0 0
        %2698 = vmatprep.subr.bf16.mxu0 0
        %2699 = vmatpush1.bf16.msra.mxu0 0
        %2700 = vmatprep.subr.bf16.mxu0 0
        %2701 = vmatpush1.bf16.msra.mxu0 0
        %2702 = vmatprep.subr.bf16.mxu0 0
        %2703 = vmatpush1.bf16.msra.mxu0 0
        %2704 = vmatprep.subr.bf16.mxu0 0
        %2705 = vmatpush1.bf16.msra.mxu0 0
        %2706 = vmatprep.subr.bf16.mxu0 0
        %2707 = vmatpush1.bf16.msra.mxu0 0
        %2708 = vmatprep.mubr.bf16.mxu0 0
        %2709 = vmatmul.mubr.bf16.gmra.mrb[0].mxu0 %v2653
        %v2710 = vpop.f32.mrb[0].mxu0
        %v2711 = vadd.f32 %v2637, %v2710
        %v2712 = vpop.f32.mrb[0].mxu0
        %v2713 = vpop.f32.mrb[0].mxu0
        %v2714 = vadd.f32 %v2637, %v2713
        %v2715 = vpop.f32.mrb[0].mxu0
        %2716 = vmatprep.mubr.bf16.mxu0 0
        %2717 = vmatmul.mubr.bf16.gmra.mrb[0].mxu0 %v2656
        %v2718 = vpop.f32.mrb[0].mxu0
        %v2719 = vadd.f32 %v2637, %v2718
        %v2720 = vpop.f32.mrb[0].mxu0
        %v2721 = vpop.f32.mrb[0].mxu0
        %v2722 = vadd.f32 %v2637, %v2721
        %v2723 = vpop.f32.mrb[0].mxu0
        %2724 = vmatprep.mubr.bf16.mxu0 0
        %2725 = vmatmul.mubr.bf16.gmra.mrb[0].mxu0 %v2659
        %v2726 = vpop.f32.mrb[0].mxu0
        %v2727 = vadd.f32 %v2637, %v2726
        %v2728 = vpop.f32.mrb[0].mxu0
        %v2729 = vpop.f32.mrb[0].mxu0
        %v2730 = vadd.f32 %v2637, %v2729
        %v2731 = vpop.f32.mrb[0].mxu0
        %2732 = vmatprep.mubr.bf16.mxu0 0
        %2733 = vmatmul.mubr.bf16.gmra.mrb[0].mxu0 %v2662
        %v2734 = vpop.f32.mrb[0].mxu0
        %v2735 = vadd.f32 %v2637, %v2734
        %v2736 = vpop.f32.mrb[0].mxu0
        %v2737 = vpop.f32.mrb[0].mxu0
        %v2738 = vadd.f32 %v2637, %v2737
        %v2739 = vpop.f32.mrb[0].mxu0
        %2740 = vmatprep.mubr.bf16.mxu0 0
        %2741 = vmatmul.mubr.bf16.gmra.mrb[0].mxu0 %v2665
        %v2742 = vpop.f32.mrb[0].mxu0
        %v2743 = vadd.f32 %v2637, %v2742
        %v2744 = vpop.f32.mrb[0].mxu0
        %v2745 = vpop.f32.mrb[0].mxu0
        %v2746 = vadd.f32 %v2637, %v2745
        %v2747 = vpop.f32.mrb[0].mxu0
        %2748 = vmatprep.mubr.bf16.mxu0 0
        %2749 = vmatmul.mubr.bf16.gmra.mrb[0].mxu0 %v2668
        %v2750 = vpop.f32.mrb[0].mxu0
        %v2751 = vadd.f32 %v2637, %v2750
        %v2752 = vpop.f32.mrb[0].mxu0
        %v2753 = vpop.f32.mrb[0].mxu0
        %v2754 = vadd.f32 %v2637, %v2753
        %v2755 = vpop.f32.mrb[0].mxu0
        %2756 = vmatprep.mubr.bf16.mxu0 0
        %2757 = vmatmul.mubr.bf16.gmra.mrb[0].mxu0 %v2671
        %v2758 = vpop.f32.mrb[0].mxu0
        %v2759 = vadd.f32 %v2637, %v2758
        %v2760 = vpop.f32.mrb[0].mxu0
        %v2761 = vpop.f32.mrb[0].mxu0
        %v2762 = vadd.f32 %v2637, %v2761
        %v2763 = vpop.f32.mrb[0].mxu0
        %2764 = vmatprep.mubr.bf16.mxu0 0
        %2765 = vmatmul.mubr.bf16.gmra.mrb[0].mxu0 %v2674
        %v2766 = vpop.f32.mrb[0].mxu0
        %v2767 = vadd.f32 %v2637, %v2766
        %v2768 = vpop.f32.mrb[0].mxu0
        %v2769 = vpop.f32.mrb[0].mxu0
        %v2770 = vadd.f32 %v2637, %v2769
        %v2771 = vpop.f32.mrb[0].mxu0
        %2772 = vdwg.mxu0
        %v2773 = vmax.f32 %v2711, 0.0
        %v2774 = vmax.f32 %v2714, 0.0
        %v2775 = vmax.f32 %v2719, 0.0
        %v2776 = vmax.f32 %v2722, 0.0
        %v2777 = vmax.f32 %v2727, 0.0
        %v2778 = vmax.f32 %v2730, 0.0
        %v2779 = vmax.f32 %v2735, 0.0
        %v2780 = vmax.f32 %v2738, 0.0
        %v2781 = vmax.f32 %v2743, 0.0
        %v2782 = vmax.f32 %v2746, 0.0
        %v2783 = vmax.f32 %v2751, 0.0
        %v2784 = vmax.f32 %v2754, 0.0
        %v2785 = vmax.f32 %v2759, 0.0
        %v2786 = vmax.f32 %v2762, 0.0
        %v2787 = vmax.f32 %v2767, 0.0
        %v2788 = vmax.f32 %v2770, 0.0
        %v2789 = vpack.c.bf16 %v2774, %v2773
        %v2790 = vpack.c.bf16 %v2776, %v2775
        %v2791 = vpack.c.bf16 %v2778, %v2777
        %v2792 = vpack.c.bf16 %v2780, %v2779
        %v2793 = vpack.c.bf16 %v2782, %v2781
        %v2794 = vpack.c.bf16 %v2784, %v2783
        %v2795 = vpack.c.bf16 %v2786, %v2785
        %v2796 = vpack.c.bf16 %v2788, %v2787
        %v2797 = vld [vmem:[%s9] sm:$0xf]
        %v2798 = vld [vmem:[%s9 + $0x4] sm:$0xf]
        %s2799 = sld [smem:[#allocation3]]
        %v2800 = vstv %s2799
        %v2803 = vunpack.c.l.b16 %v2797
        %v2804 = vunpack.c.l.b16 %v2798
        %v2805 = vpack.c.b16 %v2804, %v2803
        %v2808 = vsel %vm2401, %v2789, 0
        %v2811 = vsel %vm2401, %v2790, 0
        %v2814 = vsel %vm2401, %v2791, 0
        %v2817 = vsel %vm2401, %v2792, 0
        %v2820 = vsel %vm2401, %v2793, 0
        %v2823 = vsel %vm2401, %v2794, 0
        %v2826 = vsel %vm2401, %v2795, 0
        %v2829 = vsel %vm2401, %v2796, 0
        %2831 = vmatprep.subr.bf16.mxu0 0
        %2832 = vmatpush1.bf16.msra.mxu0 %v2805
        %2833 = vmatprep.subr.bf16.mxu0 0
        %2834 = vmatpush1.bf16.msra.mxu0 0
        %2835 = vmatprep.subr.bf16.mxu0 0
        %2836 = vmatpush1.bf16.msra.mxu0 0
        %2837 = vmatprep.subr.bf16.mxu0 0
        %2838 = vmatpush1.bf16.msra.mxu0 0
        %2839 = vmatprep.subr.bf16.mxu0 0
        %2840 = vmatpush1.bf16.msra.mxu0 0
        %2841 = vmatprep.subr.bf16.mxu0 0
        %2842 = vmatpush1.bf16.msra.mxu0 0
        %2843 = vmatprep.subr.bf16.mxu0 0
        %2844 = vmatpush1.bf16.msra.mxu0 0
        %2845 = vmatprep.subr.bf16.mxu0 0
        %2846 = vmatpush1.bf16.msra.mxu0 0
        %2847 = vmatprep.subr.bf16.mxu0 0
        %2848 = vmatpush1.bf16.msra.mxu0 0
        %2849 = vmatprep.subr.bf16.mxu0 0
        %2850 = vmatpush1.bf16.msra.mxu0 0
        %2851 = vmatprep.subr.bf16.mxu0 0
        %2852 = vmatpush1.bf16.msra.mxu0 0
        %2853 = vmatprep.subr.bf16.mxu0 0
        %2854 = vmatpush1.bf16.msra.mxu0 0
        %2855 = vmatprep.subr.bf16.mxu0 0
        %2856 = vmatpush1.bf16.msra.mxu0 0
        %2857 = vmatprep.subr.bf16.mxu0 0
        %2858 = vmatpush1.bf16.msra.mxu0 0
        %2859 = vmatprep.subr.bf16.mxu0 0
        %2860 = vmatpush1.bf16.msra.mxu0 0
        %2861 = vmatprep.subr.bf16.mxu0 0
        %2862 = vmatpush1.bf16.msra.mxu0 0
        %2863 = vmatprep.mubr.bf16.mxu0 0
        %2864 = vmatmul.mubr.bf16.gmra.mrb[0].mxu0 %v2808
        %v2865 = vpop.f32.mrb[0].mxu0
        %v2866 = vadd.f32 %v2800, %v2865
        %v2867 = vpop.f32.mrb[0].mxu0
        %v2868 = vpop.f32.mrb[0].mxu0
        %v2869 = vadd.f32 %v2800, %v2868
        %v2870 = vpop.f32.mrb[0].mxu0
        %2871 = vmatprep.mubr.bf16.mxu0 0
        %2872 = vmatmul.mubr.bf16.gmra.mrb[0].mxu0 %v2811
        %v2873 = vpop.f32.mrb[0].mxu0
        %v2874 = vadd.f32 %v2800, %v2873
        %v2875 = vpop.f32.mrb[0].mxu0
        %v2876 = vpop.f32.mrb[0].mxu0
        %v2877 = vadd.f32 %v2800, %v2876
        %v2878 = vpop.f32.mrb[0].mxu0
        %2879 = vmatprep.mubr.bf16.mxu0 0
        %2880 = vmatmul.mubr.bf16.gmra.mrb[0].mxu0 %v2814
        %v2881 = vpop.f32.mrb[0].mxu0
        %v2882 = vadd.f32 %v2800, %v2881
        %v2883 = vpop.f32.mrb[0].mxu0
        %v2884 = vpop.f32.mrb[0].mxu0
        %v2885 = vadd.f32 %v2800, %v2884
        %v2886 = vpop.f32.mrb[0].mxu0
        %2887 = vmatprep.mubr.bf16.mxu0 0
        %2888 = vmatmul.mubr.bf16.gmra.mrb[0].mxu0 %v2817
        %v2889 = vpop.f32.mrb[0].mxu0
        %v2890 = vadd.f32 %v2800, %v2889
        %v2891 = vpop.f32.mrb[0].mxu0
        %v2892 = vpop.f32.mrb[0].mxu0
        %v2893 = vadd.f32 %v2800, %v2892
        %v2894 = vpop.f32.mrb[0].mxu0
        %2895 = vmatprep.mubr.bf16.mxu0 0
        %2896 = vmatmul.mubr.bf16.gmra.mrb[0].mxu0 %v2820
        %v2897 = vpop.f32.mrb[0].mxu0
        %v2898 = vadd.f32 %v2800, %v2897
        %v2899 = vpop.f32.mrb[0].mxu0
        %v2900 = vpop.f32.mrb[0].mxu0
        %v2901 = vadd.f32 %v2800, %v2900
        %v2902 = vpop.f32.mrb[0].mxu0
        %2903 = vmatprep.mubr.bf16.mxu0 0
        %2904 = vmatmul.mubr.bf16.gmra.mrb[0].mxu0 %v2823
        %v2905 = vpop.f32.mrb[0].mxu0
        %v2906 = vadd.f32 %v2800, %v2905
        %v2907 = vpop.f32.mrb[0].mxu0
        %v2908 = vpop.f32.mrb[0].mxu0
        %v2909 = vadd.f32 %v2800, %v2908
        %v2910 = vpop.f32.mrb[0].mxu0
        %2911 = vmatprep.mubr.bf16.mxu0 0
        %2912 = vmatmul.mubr.bf16.gmra.mrb[0].mxu0 %v2826
        %v2913 = vpop.f32.mrb[0].mxu0
        %v2914 = vadd.f32 %v2800, %v2913
        %v2915 = vpop.f32.mrb[0].mxu0
        %v2916 = vpop.f32.mrb[0].mxu0
        %v2917 = vadd.f32 %v2800, %v2916
        %v2918 = vpop.f32.mrb[0].mxu0
        %2919 = vmatprep.mubr.bf16.mxu0 0
        %2920 = vmatmul.mubr.bf16.gmra.mrb[0].mxu0 %v2829
        %v2921 = vpop.f32.mrb[0].mxu0
        %v2922 = vadd.f32 %v2800, %v2921
        %v2923 = vpop.f32.mrb[0].mxu0
        %v2924 = vpop.f32.mrb[0].mxu0
        %v2925 = vadd.f32 %v2800, %v2924
        %v2926 = vpop.f32.mrb[0].mxu0
        %2927 = vdwg.mxu0
        %v2928 = vadd.f32 %v2193, %v2111
        %v2929 = vadd.f32 %v2194, %v2112
        %v2930 = vadd.f32 %v2195, %v2113
        %v2931 = vadd.f32 %v2196, %v2114
        %v2932 = vadd.f32 %v2197, %v2115
        %v2933 = vadd.f32 %v2198, %v2116
        %v2934 = vadd.f32 %v2199, %v2117
        %v2935 = vadd.f32 %v2200, %v2118
        %v2936 = vadd.f32 %v2201, %v2119
        %v2937 = vadd.f32 %v2202, %v2120
        %v2938 = vadd.f32 %v2203, %v2121
        %v2939 = vadd.f32 %v2204, %v2122
        %v2940 = vadd.f32 %v2205, %v2123
        %v2941 = vadd.f32 %v2206, %v2124
        %v2942 = vadd.f32 %v2207, %v2125
        %v2943 = vadd.f32 %v2208, %v2126
        %2960 = vrot.lane.b32.xlu0 %v2866, 8
        %v2961 = vpop.permute.xlu0 %2960
        %2962 = vrot.lane.b32.xlu0 %v2869, 8
        %v2963 = vpop.permute.xlu0 %2962
        %2964 = vrot.lane.b32.xlu0 %v2874, 8
        %v2965 = vpop.permute.xlu0 %2964
        %2966 = vrot.lane.b32.xlu0 %v2877, 8
        %v2967 = vpop.permute.xlu0 %2966
        %2968 = vrot.lane.b32.xlu0 %v2882, 8
        %v2969 = vpop.permute.xlu0 %2968
        %2970 = vrot.lane.b32.xlu0 %v2885, 8
        %v2971 = vpop.permute.xlu0 %2970
        %2972 = vrot.lane.b32.xlu0 %v2890, 8
        %v2973 = vpop.permute.xlu0 %2972
        %2974 = vrot.lane.b32.xlu0 %v2893, 8
        %v2975 = vpop.permute.xlu0 %2974
        %2976 = vrot.lane.b32.xlu0 %v2898, 8
        %v2977 = vpop.permute.xlu0 %2976
        %2978 = vrot.lane.b32.xlu0 %v2901, 8
        %v2979 = vpop.permute.xlu0 %2978
        %2980 = vrot.lane.b32.xlu0 %v2906, 8
        %v2981 = vpop.permute.xlu0 %2980
        %2982 = vrot.lane.b32.xlu0 %v2909, 8
        %v2983 = vpop.permute.xlu0 %2982
        %2984 = vrot.lane.b32.xlu0 %v2914, 8
        %v2985 = vpop.permute.xlu0 %2984
        %2986 = vrot.lane.b32.xlu0 %v2917, 8
        %v2987 = vpop.permute.xlu0 %2986
        %2988 = vrot.lane.b32.xlu0 %v2922, 8
        %v2989 = vpop.permute.xlu0 %2988
        %2990 = vrot.lane.b32.xlu0 %v2925, 8
        %v2991 = vpop.permute.xlu0 %2990
        %v3008 = vadd.f32 %v2928, %v2961
        %v3009 = vadd.f32 %v2929, %v2963
        %v3010 = vadd.f32 %v2930, %v2965
        %v3011 = vadd.f32 %v2931, %v2967
        %v3012 = vadd.f32 %v2932, %v2969
        %v3013 = vadd.f32 %v2933, %v2971
        %v3014 = vadd.f32 %v2934, %v2973
        %v3015 = vadd.f32 %v2935, %v2975
        %v3016 = vadd.f32 %v2936, %v2977
        %v3017 = vadd.f32 %v2937, %v2979
        %v3018 = vadd.f32 %v2938, %v2981
        %v3019 = vadd.f32 %v2939, %v2983
        %v3020 = vadd.f32 %v2940, %v2985
        %v3021 = vadd.f32 %v2941, %v2987
        %v3022 = vadd.f32 %v2942, %v2989
        %v3023 = vadd.f32 %v2943, %v2991
        %v3024 = vlaneseq
        %v3025 = vshrl.u32 %v3024, 7
        %v3026 = vadd.s32 %v3025, 8
        %v3027 = vadd.s32 %v3025, 16
        %v3028 = vadd.s32 %v3025, 24
        %v3029 = vadd.s32 %v3025, 32
        %v3030 = vadd.s32 %v3025, 40
        %v3031 = vadd.s32 %v3025, 48
        %v3032 = vadd.s32 %v3025, 56
        %v3033 = vadd.s32 %v3025, 64
        %v3034 = vadd.s32 %v3025, 72
        %v3035 = vadd.s32 %v3025, 80
        %v3036 = vadd.s32 %v3025, 88
        %v3037 = vadd.s32 %v3025, 96
        %v3038 = vadd.s32 %v3025, 104
        %v3039 = vadd.s32 %v3025, 112
        %v3040 = vadd.s32 %v3025, 120
        %vm3041 = vcmp.eq.s32.totalorder %v3025, %v535
        %vm3042 = vcmp.eq.s32.totalorder %v3026, %v535
        %vm3043 = vcmp.eq.s32.totalorder %v3027, %v535
        %vm3044 = vcmp.eq.s32.totalorder %v3028, %v535
        %vm3045 = vcmp.eq.s32.totalorder %v3029, %v535
        %vm3046 = vcmp.eq.s32.totalorder %v3030, %v535
        %vm3047 = vcmp.eq.s32.totalorder %v3031, %v535
        %vm3048 = vcmp.eq.s32.totalorder %v3032, %v535
        %vm3049 = vcmp.eq.s32.totalorder %v3033, %v535
        %vm3050 = vcmp.eq.s32.totalorder %v3034, %v535
        %vm3051 = vcmp.eq.s32.totalorder %v3035, %v535
        %vm3052 = vcmp.eq.s32.totalorder %v3036, %v535
        %vm3053 = vcmp.eq.s32.totalorder %v3037, %v535
        %vm3054 = vcmp.eq.s32.totalorder %v3038, %v535
        %vm3055 = vcmp.eq.s32.totalorder %v3039, %v535
        %vm3056 = vcmp.eq.s32.totalorder %v3040, %v535
        %v3057 = vsel %vm3041, 1, 0
        %v3058 = vsel %vm3042, 1, 0
        %v3059 = vsel %vm3043, 1, 0
        %v3060 = vsel %vm3044, 1, 0
        %v3061 = vsel %vm3045, 1, 0
        %v3062 = vsel %vm3046, 1, 0
        %v3063 = vsel %vm3047, 1, 0
        %v3064 = vsel %vm3048, 1, 0
        %v3065 = vsel %vm3049, 1, 0
        %v3066 = vsel %vm3050, 1, 0
        %v3067 = vsel %vm3051, 1, 0
        %v3068 = vsel %vm3052, 1, 0
        %v3069 = vsel %vm3053, 1, 0
        %v3070 = vsel %vm3054, 1, 0
        %v3071 = vsel %vm3055, 1, 0
        %v3072 = vsel %vm3056, 1, 0
        %v3073 = vcvt.s32.f32 %v3057
        %v3074 = vcvt.s32.f32 %v3058
        %v3075 = vcvt.s32.f32 %v3059
        %v3076 = vcvt.s32.f32 %v3060
        %v3077 = vcvt.s32.f32 %v3061
        %v3078 = vcvt.s32.f32 %v3062
        %v3079 = vcvt.s32.f32 %v3063
        %v3080 = vcvt.s32.f32 %v3064
        %v3081 = vcvt.s32.f32 %v3065
        %v3082 = vcvt.s32.f32 %v3066
        %v3083 = vcvt.s32.f32 %v3067
        %v3084 = vcvt.s32.f32 %v3068
        %v3085 = vcvt.s32.f32 %v3069
        %v3086 = vcvt.s32.f32 %v3070
        %v3087 = vcvt.s32.f32 %v3071
        %v3088 = vcvt.s32.f32 %v3072
        %3090 = vset.pattern.permute.xlu0 8
        %3091 = vperm.xlu0 %3090, %v3008
        %v3092 = vpop.permute.xlu0 %3091
        %3095 = vset.pattern.permute.xlu0 8
        %3096 = vperm.xlu0 %3095, %v3009
        %v3097 = vpop.permute.xlu0 %3096
        %3100 = vset.pattern.permute.xlu0 8
        %3101 = vperm.xlu0 %3100, %v3010
        %v3102 = vpop.permute.xlu0 %3101
        %3105 = vset.pattern.permute.xlu0 8
        %3106 = vperm.xlu0 %3105, %v3011
        %v3107 = vpop.permute.xlu0 %3106
        %3110 = vset.pattern.permute.xlu0 8
        %3111 = vperm.xlu0 %3110, %v3012
        %v3112 = vpop.permute.xlu0 %3111
        %3115 = vset.pattern.permute.xlu0 8
        %3116 = vperm.xlu0 %3115, %v3013
        %v3117 = vpop.permute.xlu0 %3116
        %3120 = vset.pattern.permute.xlu0 8
        %3121 = vperm.xlu0 %3120, %v3014
        %v3122 = vpop.permute.xlu0 %3121
        %3125 = vset.pattern.permute.xlu0 8
        %3126 = vperm.xlu0 %3125, %v3015
        %v3127 = vpop.permute.xlu0 %3126
        %3130 = vset.pattern.permute.xlu0 8
        %3131 = vperm.xlu0 %3130, %v3016
        %v3132 = vpop.permute.xlu0 %3131
        %3135 = vset.pattern.permute.xlu0 8
        %3136 = vperm.xlu0 %3135, %v3017
        %v3137 = vpop.permute.xlu0 %3136
        %3140 = vset.pattern.permute.xlu0 8
        %3141 = vperm.xlu0 %3140, %v3018
        %v3142 = vpop.permute.xlu0 %3141
        %3145 = vset.pattern.permute.xlu0 8
        %3146 = vperm.xlu0 %3145, %v3019
        %v3147 = vpop.permute.xlu0 %3146
        %3150 = vset.pattern.permute.xlu0 8
        %3151 = vperm.xlu0 %3150, %v3020
        %v3152 = vpop.permute.xlu0 %3151
        %3155 = vset.pattern.permute.xlu0 8
        %3156 = vperm.xlu0 %3155, %v3021
        %v3157 = vpop.permute.xlu0 %3156
        %3160 = vset.pattern.permute.xlu0 8
        %3161 = vperm.xlu0 %3160, %v3022
        %v3162 = vpop.permute.xlu0 %3161
        %3165 = vset.pattern.permute.xlu0 8
        %3166 = vperm.xlu0 %3165, %v3023
        %v3167 = vpop.permute.xlu0 %3166
        %v3169 = vmul.f32 %v3092, %v3073
        %v3170 = vmul.f32 %v3097, %v3074
        %v3171 = vmul.f32 %v3102, %v3075
        %v3172 = vmul.f32 %v3107, %v3076
        %v3173 = vmul.f32 %v3112, %v3077
        %v3174 = vmul.f32 %v3117, %v3078
        %v3175 = vmul.f32 %v3122, %v3079
        %v3176 = vmul.f32 %v3127, %v3080
        %v3177 = vmul.f32 %v3132, %v3081
        %v3178 = vmul.f32 %v3137, %v3082
        %v3179 = vmul.f32 %v3142, %v3083
        %v3180 = vmul.f32 %v3147, %v3084
        %v3181 = vmul.f32 %v3152, %v3085
        %v3182 = vmul.f32 %v3157, %v3086
        %v3183 = vmul.f32 %v3162, %v3087
        %v3184 = vmul.f32 %v3167, %v3088
        %v3185 = vadd.f32 %v3169, %v3170
        %v3186 = vadd.f32 %v3185, %v3171
        %v3187 = vadd.f32 %v3186, %v3172
        %v3188 = vadd.f32 %v3187, %v3173
        %v3189 = vadd.f32 %v3188, %v3174
        %v3190 = vadd.f32 %v3189, %v3175
        %v3191 = vadd.f32 %v3190, %v3176
        %v3192 = vadd.f32 %v3191, %v3177
        %v3193 = vadd.f32 %v3192, %v3178
        %v3194 = vadd.f32 %v3193, %v3179
        %v3195 = vadd.f32 %v3194, %v3180
        %v3196 = vadd.f32 %v3195, %v3181
        %v3197 = vadd.f32 %v3196, %v3182
        %v3198 = vadd.f32 %v3197, %v3183
        %v3199 = vadd.f32 %v3198, %v3184
        %v3200 = vrot.slane %v3199, 4
        %v3201 = vadd.f32 %v3199, %v3200
        %v3202 = vrot.slane %v3201, 2
        %v3203 = vadd.f32 %v3201, %v3202
        %v3204 = vrot.slane %v3203, 1
        %v3205 = vadd.f32 %v3203, %v3204
        %3206 = vst [vmem:[%s424] sm:$0x1] %v3205
        %s3207 = sand.u32 %s298, 1
        %s3208 = scalar_lea.sflag [#allocation5], %s3207
        %s3209 = sand.u32 %s298, 1
        %s3210 = scalar_lea.vmem [#allocation4], %s3209
        // Predicated region
        $region69: #{tpu_custom_call.1} parent=67 // pred_check
          %p3211 = pneg %p308
        $region70: #{tpu_custom_call.1} parent=67 // pred_check_branch
          %3213 = sbr.rel (%p3211) target = $region72
        $region71: #{tpu_custom_call.1} parent=67 // pred_region
          %s3215 = ssub.s32 16, 16
          %3216 = vsyncadd %s3208, %s3215
          %s3217 = smul.addr %s28, 16
          %s3218 = scalar_lea.hbm %s12, %s3217
          %s3220 = sshll.u32 %s3210, 4
          %s3221 = int_to_ptr.vmem [resolvable:$true] %s3220
          %3223 = dma.vmem_to_hbm [thread:$0]  %s3221, 16, %s3218, %s3208
        $region72: #{tpu_custom_call.1} parent=67 // pred_fallthru
          _
      $region68: #{tpu_custom_call.1} parent=5 // pred_fallthru
        _
      %p3224 = scmp.le.s32.totalorder 2, %s23
      // Predicated region
      $region73: #{tpu_custom_call.1} parent=5 // pred_check
        %p3225 = pneg %p3224
      $region74: #{tpu_custom_call.1} parent=5 // pred_check_branch
        %3227 = sbr.rel (%p3225) target = $region76
      $region75: #{tpu_custom_call.1} parent=5 // pred_region
        %s3228 = ssub.s32 %s23, 2
        // Predicated region
        $region77: #{tpu_custom_call.1} parent=75 // pred_check
          %p3229 = pneg %p314
        $region78: #{tpu_custom_call.1} parent=75 // pred_check_branch
          %3231 = sbr.rel (%p3229) target = $region80
        $region79: #{tpu_custom_call.1} parent=75 // pred_region
          %s3232 = sand.u32 %s299, 1
          %s3233 = scalar_lea.sflag [#allocation5], %s3232
          %s3234 = sand.u32 %s299, 1
          %s3235 = scalar_lea.vmem [#allocation4], %s3234
          %3236 = dma.done %s3233, 16
        $region80: #{tpu_custom_call.1} parent=75 // pred_fallthru
          _
      $region76: #{tpu_custom_call.1} parent=5 // pred_fallthru
        _
    $region6: #{tpu_custom_call.1} parent=1 // loop_footer
      %s27 = sadd.s32 1, %s23
    $region7: #{tpu_custom_call.1} parent=1 // loop_footer_branch
      %22 = sbr.rel target = $region3
    $region8: #{tpu_custom_call.1} parent=1 // loop_exit
      _
    %3237 = vsyncpa [#allocation5], 1
    %s3238 = scalar_lea.sflag [#allocation5], 1
    %3239 = vsyncpa %s3238, 1

</llo_original>
